<compile_context>
chip_gen: v7x
topology: tpu7x:2x2x1
jax: 0.10.0
libtpu: 0.0.40
codegen_flags: <defaults>
</compile_context>

<pallas_src>
import functools
import math

import jax
import jax.numpy as jnp
from jax.experimental import pallas as pl
from jax.experimental.pallas import tpu as pltpu

LANE = 128  # pad every last dim to a multiple of this (lane-dense layout)


def _round_up(x, m):
    return ((x + m - 1) // m) * m


# --------------------------------------------------------------------------- #
# Kernel (single fused invocation)
# --------------------------------------------------------------------------- #
def fused_ngcn_kernel(*refs, iterations):
    """H = X@W ; H = A@H  (iterations-1 times) ; out = H + bias.

    All operands are VMEM-resident; H is kept in an f32 VMEM scratch the whole
    time (only the MXU input cast is bf16).
    """
    if iterations > 1:
        x_ref, w_ref, a_ref, b_ref, o_ref, h_ref = refs
    else:
        x_ref, w_ref, b_ref, o_ref, h_ref = refs
        a_ref = None

    # Projection: bf16 x bf16 -> f32 accumulation, result held in f32 scratch.
    h_ref[...] = jnp.dot(x_ref[...], w_ref[...],
                         preferred_element_type=jnp.float32)
    # TODO(synk): dropout is identity here (module evaluated with training=False);
    # a training-mode version would build the mask with pltpu.prng_seed +
    # pltpu.prng_random_bits.

    # Adjacency propagation, H resident in f32 VMEM between steps.
    for _ in range(iterations - 1):
        h_ref[...] = jnp.dot(a_ref[...], h_ref[...].astype(a_ref.dtype),
                             preferred_element_type=jnp.float32)

    o_ref[...] = (h_ref[...] + b_ref[...]).astype(o_ref.dtype)


# --------------------------------------------------------------------------- #
# Wrappers
# --------------------------------------------------------------------------- #
def prepare_inputs(adj_dense, features, weight, bias):
    """Pad + cast once; for inference these are constants (hoisted out of forward)."""
    n, f_in = features.shape
    f_out = weight.shape[1]
    n_pad = _round_up(n, LANE)
    f_in_pad = _round_up(f_in, LANE)
    f_out_pad = _round_up(f_out, LANE)

    x_p = jnp.zeros((n_pad, f_in_pad), jnp.bfloat16)
    x_p = x_p.at[:n, :f_in].set(features.astype(jnp.bfloat16))
    w_p = jnp.zeros((f_in_pad, f_out_pad), jnp.bfloat16)
    w_p = w_p.at[:f_in, :f_out].set(weight.astype(jnp.bfloat16))
    b_p = jnp.zeros((1, f_out_pad), jnp.float32)
    b_p = b_p.at[:, :f_out].set(bias.astype(jnp.float32))
    a_p = jnp.zeros((n_pad, n_pad), jnp.bfloat16)
    a_p = a_p.at[:n, :n].set(adj_dense.astype(jnp.bfloat16))
    # TODO(synk): for truly sparse adjacencies (nnz << N^2), replace the densified
    # A@H with a blocked SpMM carrying per-row-block column indices via
    # PrefetchScalarGridSpec so work scales with nnz instead of N^2.
    return x_p, w_p, b_p, a_p


def dense_ngcn_forward_padded(x_p, w_p, b_p, a_p, *, iterations):
    n_pad, f_in_pad = x_p.shape
    f_out_pad = w_p.shape[1]

    inputs = [x_p, w_p]
    in_specs = [
        pl.BlockSpec((n_pad, f_in_pad), lambda i: (0, 0)),      # X (full)
        pl.BlockSpec((f_in_pad, f_out_pad), lambda i: (0, 0)),  # W (full)
    ]
    if iterations > 1:
        inputs.append(a_p)
        in_specs.append(pl.BlockSpec((n_pad, n_pad), lambda i: (0, 0)))  # A (full)
    inputs.append(b_p)
    in_specs.append(pl.BlockSpec((1, f_out_pad), lambda i: (0, 0)))      # bias

    flops = (2 * n_pad * f_in_pad * f_out_pad
             + (iterations - 1) * 2 * n_pad * n_pad * f_out_pad)
    bytes_accessed = (sum(int(a.size) * a.dtype.itemsize for a in inputs)
                      + n_pad * f_out_pad * 4)

    return pl.pallas_call(
        functools.partial(fused_ngcn_kernel, iterations=iterations),
        out_shape=jax.ShapeDtypeStruct((n_pad, f_out_pad), jnp.float32),
        grid_spec=pltpu.PrefetchScalarGridSpec(
            num_scalar_prefetch=0,
            grid=(1,),                      # everything fits VMEM: one invocation
            in_specs=in_specs,
            out_specs=pl.BlockSpec((n_pad, f_out_pad), lambda i: (0, 0)),
            scratch_shapes=[pltpu.VMEM((n_pad, f_out_pad), jnp.float32)],  # H (f32)
        ),
        compiler_params=pltpu.CompilerParams(
            dimension_semantics=("arbitrary",),
            vmem_limit_bytes=32 * 1024 * 1024,  # well above the ~1 MiB actually used
        ),
        cost_estimate=pl.CostEstimate(flops=flops, transcendentals=0,
                                      bytes_accessed=bytes_accessed),
    )(*inputs)


def dense_ngcn_forward(adj_dense, features, weight, bias, *, iterations):
    """Full DenseNGCNLayer forward (inference).  Returns (N, out_channels) f32."""
    n = features.shape[0]
    f_out = weight.shape[1]
    x_p, w_p, b_p, a_p = prepare_inputs(adj_dense, features, weight, bias)
    out = dense_ngcn_forward_padded(x_p, w_p, b_p, a_p, iterations=iterations)
    return out[:n, :f_out]


# --------------------------------------------------------------------------- #
# Harness
# --------------------------------------------------------------------------- #
def xavier_uniform(key, shape, dtype=jnp.float32):
    fan_in, fan_out = shape[0], shape[1]
    bound = math.sqrt(6.0 / (fan_in + fan_out))
    return jax.random.uniform(key, shape, dtype, minval=-bound, maxval=bound)


def build_normalized_ring_adjacency(n):
    """Sparse D^{-1/2}(A+I)D^{-1/2} for a ring graph, as (indices, values)."""
    rows, cols = [], []
    for i in range(n):
        rows += [i, i, i]
        cols += [i, (i + 1) % n, (i - 1) % n]
    indices = jnp.array([rows, cols], dtype=jnp.int32)
    deg = 3.0  # every node has degree 3 (self + two neighbors)
    values = jnp.full((indices.shape[1],), 1.0 / deg, dtype=jnp.float32)
    return indices, values


def densify(indices, values, n):
    # spmm glue: densify the COO adjacency in plain JAX outside the kernel.
    return jnp.zeros((n, n), jnp.float32).at[indices[0], indices[1]].add(values)


if __name__ == "__main__":
    N = 256              # number of graph nodes
    in_channels = 64
    out_channels = 64
    iterations = 3
    dropout_rate = 0.5   # unused in inference mode

    key = jax.random.PRNGKey(0)
    k_feat, k_w, k_b = jax.random.split(key, 3)

    features = jax.random.normal(k_feat, (N, in_channels), jnp.float32)
    weight = xavier_uniform(k_w, (in_channels, out_channels))
    bias = xavier_uniform(k_b, (1, out_channels))

    indices, values = build_normalized_ring_adjacency(N)
    adj_dense = densify(indices, values, N)

    out = dense_ngcn_forward(adj_dense, features, weight, bias,
                             iterations=iterations)
    out = jax.block_until_ready(out)

    # Reference in plain JAX, mirroring exactly where the kernel rounds to bf16
    # (MXU input casts only; H itself stays f32), so the comparison is tight.
    xb = features.astype(jnp.bfloat16).astype(jnp.float32)
    wb = weight.astype(jnp.bfloat16).astype(jnp.float32)
    ab = adj_dense.astype(jnp.bfloat16).astype(jnp.float32)
    ref = jnp.dot(xb, wb, precision=jax.lax.Precision.HIGHEST)
    for _ in range(iterations - 1):
        hb = ref.astype(jnp.bfloat16).astype(jnp.float32)  # MXU input cast
        ref = jnp.dot(ab, hb, precision=jax.lax.Precision.HIGHEST)
    ref = ref + bias

    assert out.shape == (N, out_channels), out.shape
    assert jnp.allclose(out, ref, atol=1e-3, rtol=1e-3), "mismatch vs reference"

    print("KERNEL_OK")
</pallas_src>

<mosaic_0001>
module attributes {stable_mosaic.version = 11 : i64} {
  func.func @fused_ngcn_kernel(%arg0: i32, %arg1: memref<256x128xbf16, #tpu.memory_space<vmem>>, %arg2: memref<128x128xbf16, #tpu.memory_space<vmem>>, %arg3: memref<256x256xbf16, #tpu.memory_space<vmem>>, %arg4: memref<1x128xf32, #tpu.memory_space<vmem>>, %arg5: memref<256x128xf32, #tpu.memory_space<vmem>>, %arg6: memref<256x128xf32, #tpu.memory_space<vmem>>) attributes {dimension_semantics = [#tpu.dimension_semantics<arbitrary>], iteration_bounds = array<i64: 1>, scalar_prefetch = 0 : i64, scratch_operands = 1 : i64, tpu.core_type = #tpu.core_type<tc>, window_params = [{pipeline_mode = #tpu.pipeline_mode<synchronous>, transform_indices = @transform_0, window_bounds = array<i64: 256, 128>}, {pipeline_mode = #tpu.pipeline_mode<synchronous>, transform_indices = @transform_1, window_bounds = array<i64: 128, 128>}, {pipeline_mode = #tpu.pipeline_mode<synchronous>, transform_indices = @transform_2, window_bounds = array<i64: 256, 256>}, {pipeline_mode = #tpu.pipeline_mode<synchronous>, transform_indices = @transform_3, window_bounds = array<i64: 1, 128>}, {pipeline_mode = #tpu.pipeline_mode<synchronous>, transform_indices = @transform_4, window_bounds = array<i64: 256, 128>}]} {
    %c0 = arith.constant 0 : index
    %c0_0 = arith.constant 0 : index
    %0 = vector.load %arg1[%c0, %c0_0] : memref<256x128xbf16, #tpu.memory_space<vmem>>, vector<256x128xbf16>
    %c0_1 = arith.constant 0 : index
    %c0_2 = arith.constant 0 : index
    %1 = vector.load %arg2[%c0_1, %c0_2] : memref<128x128xbf16, #tpu.memory_space<vmem>>, vector<128x128xbf16>
    %cst = arith.constant dense<0.000000e+00> : vector<256x128xf32>
    %2 = tpu.matmul %0, %1, %cst {dimension_numbers = #tpu.dot_dimension_numbers<[1], [0], [0], [1], [0, 0, 1, 1], [], []>} : vector<256x128xbf16>, vector<128x128xbf16>, vector<256x128xf32> -> vector<256x128xf32>
    %c0_3 = arith.constant 0 : index
    %c0_4 = arith.constant 0 : index
    %3 = vector.load %arg6[%c0_3, %c0_4] : memref<256x128xf32, #tpu.memory_space<vmem>>, vector<256x128xf32>
    tpu.vector_store %arg6[%c0_3, %c0_4], %2 {strides = array<i32>} : memref<256x128xf32, #tpu.memory_space<vmem>>, vector<256x128xf32>,
    %c0_5 = arith.constant 0 : index
    %c0_6 = arith.constant 0 : index
    %4 = vector.load %arg3[%c0_5, %c0_6] : memref<256x256xbf16, #tpu.memory_space<vmem>>, vector<256x256xbf16>
    %c0_7 = arith.constant 0 : index
    %c0_8 = arith.constant 0 : index
    %5 = vector.load %arg6[%c0_7, %c0_8] : memref<256x128xf32, #tpu.memory_space<vmem>>, vector<256x128xf32>
    %6 = arith.truncf %5 : vector<256x128xf32> to vector<256x128xbf16>
    %cst_9 = arith.constant dense<0.000000e+00> : vector<256x128xf32>
    %7 = tpu.matmul %4, %6, %cst_9 {dimension_numbers = #tpu.dot_dimension_numbers<[1], [0], [0], [1], [0, 0, 1, 1], [], []>} : vector<256x256xbf16>, vector<256x128xbf16>, vector<256x128xf32> -> vector<256x128xf32>
    %c0_10 = arith.constant 0 : index
    %c0_11 = arith.constant 0 : index
    %8 = vector.load %arg6[%c0_10, %c0_11] : memref<256x128xf32, #tpu.memory_space<vmem>>, vector<256x128xf32>
    tpu.vector_store %arg6[%c0_10, %c0_11], %7 {strides = array<i32>} : memref<256x128xf32, #tpu.memory_space<vmem>>, vector<256x128xf32>,
    %c0_12 = arith.constant 0 : index
    %c0_13 = arith.constant 0 : index
    %9 = vector.load %arg3[%c0_12, %c0_13] : memref<256x256xbf16, #tpu.memory_space<vmem>>, vector<256x256xbf16>
    %c0_14 = arith.constant 0 : index
    %c0_15 = arith.constant 0 : index
    %10 = vector.load %arg6[%c0_14, %c0_15] : memref<256x128xf32, #tpu.memory_space<vmem>>, vector<256x128xf32>
    %11 = arith.truncf %10 : vector<256x128xf32> to vector<256x128xbf16>
    %cst_16 = arith.constant dense<0.000000e+00> : vector<256x128xf32>
    %12 = tpu.matmul %9, %11, %cst_16 {dimension_numbers = #tpu.dot_dimension_numbers<[1], [0], [0], [1], [0, 0, 1, 1], [], []>} : vector<256x256xbf16>, vector<256x128xbf16>, vector<256x128xf32> -> vector<256x128xf32>
    %c0_17 = arith.constant 0 : index
    %c0_18 = arith.constant 0 : index
    %13 = vector.load %arg6[%c0_17, %c0_18] : memref<256x128xf32, #tpu.memory_space<vmem>>, vector<256x128xf32>
    tpu.vector_store %arg6[%c0_17, %c0_18], %12 {strides = array<i32>} : memref<256x128xf32, #tpu.memory_space<vmem>>, vector<256x128xf32>,
    %c0_19 = arith.constant 0 : index
    %c0_20 = arith.constant 0 : index
    %14 = vector.load %arg6[%c0_19, %c0_20] : memref<256x128xf32, #tpu.memory_space<vmem>>, vector<256x128xf32>
    %c0_21 = arith.constant 0 : index
    %c0_22 = arith.constant 0 : index
    %15 = vector.load %arg4[%c0_21, %c0_22] : memref<1x128xf32, #tpu.memory_space<vmem>>, vector<1x128xf32>
    %16 = vector.broadcast %15 : vector<1x128xf32> to vector<256x128xf32>
    %17 = arith.addf %14, %16 : vector<256x128xf32>
    %c0_23 = arith.constant 0 : index
    %c0_24 = arith.constant 0 : index
    %18 = vector.load %arg5[%c0_23, %c0_24] : memref<256x128xf32, #tpu.memory_space<vmem>>, vector<256x128xf32>
    tpu.vector_store %arg5[%c0_23, %c0_24], %17 {strides = array<i32>} : memref<256x128xf32, #tpu.memory_space<vmem>>, vector<256x128xf32>,
    return
  }
  func.func @transform_0(%arg0: i32) -> (i32, i32) {
    %c0_i32 = arith.constant 0 : i32
    %c0_i32_0 = arith.constant 0 : i32
    %c0_i32_1 = arith.constant 0 : i32
    return %c0_i32, %c0_i32_0 : i32, i32
  }
  func.func @transform_1(%arg0: i32) -> (i32, i32) {
    %c0_i32 = arith.constant 0 : i32
    %c0_i32_0 = arith.constant 0 : i32
    %c0_i32_1 = arith.constant 0 : i32
    return %c0_i32, %c0_i32_0 : i32, i32
  }
  func.func @transform_2(%arg0: i32) -> (i32, i32) {
    %c0_i32 = arith.constant 0 : i32
    %c0_i32_0 = arith.constant 0 : i32
    %c0_i32_1 = arith.constant 0 : i32
    return %c0_i32, %c0_i32_0 : i32, i32
  }
  func.func @transform_3(%arg0: i32) -> (i32, i32) {
    %c0_i32 = arith.constant 0 : i32
    %c0_i32_0 = arith.constant 0 : i32
    %c0_i32_1 = arith.constant 0 : i32
    return %c0_i32, %c0_i32_0 : i32, i32
  }
  func.func @transform_4(%arg0: i32) -> (i32, i32) {
    %c0_i32 = arith.constant 0 : i32
    %c0_i32_0 = arith.constant 0 : i32
    %c0_i32_1 = arith.constant 0 : i32
    return %c0_i32, %c0_i32_0 : i32, i32
  }
}

</mosaic_0001>

<llo_original>
// kernel: tpu_custom_call.1
$region0: #{tpu_custom_call.1}
  #allocation0 [shape = 'u32[]', space=smem, size = 0x4, offset = 0x4, fixed_abs, tag = 'smem constant byte address 0x4 - core index']
  #allocation1 [shape = 'u32[144,128]{1,0:T(1,128)}', space=vmem, size = 0x12000, scoped, tag = 'internal scratch']
  #allocation2 [shape = 'f32[256,128]{1,0:T(8,128)}', space=vmem, size = 0x20000, scoped, tag = 'scratch operand']
  %s0 = inlined_call_operand.hbm [shape: bf16[256,128], index: 0, kind: input, shape index: {}]
  %s1 = inlined_call_operand.hbm [shape: bf16[128,128], index: 1, kind: input, shape index: {}]
  %s2 = inlined_call_operand.hbm [shape: bf16[256,256], index: 2, kind: input, shape index: {}]
  %s3 = inlined_call_operand.vmem [shape: f32[1,128], index: 3, kind: input, shape index: {}]
  %s4 = inlined_call_operand.hbm [shape: f32[256,128], index: 4, kind: output, shape index: {}]
  %s5 = sld [smem:[#allocation0]]
  $region38: #{tpu_custom_call.1} parent=0
    _
  %s7 = ssub.s32 1, %s5
  %s8 = scalar_select 0, %s7, %s5
  $region1: #{tpu_custom_call.1} parent=0
    #allocation3 [shape = 'u8[65536]{0}', space=vmem, size = 0x10000, scoped, tag = 'input window, operand 0, single buffered']
    #allocation4 [shape = 's32[1]{0}', space=sflag, size = 0x4, scoped, tag = 'scoped memory for tpu_custom_call.1']
    #allocation5 [shape = 's32[1]{0}', space=sflag, size = 0x4, scoped, tag = 'scoped memory for tpu_custom_call.1']
    #allocation6 [shape = 'u8[32768]{0}', space=vmem, size = 0x8000, scoped, tag = 'input window, operand 1, single buffered']
    #allocation7 [shape = 's32[1]{0}', space=sflag, size = 0x4, scoped, tag = 'scoped memory for tpu_custom_call.1']
    #allocation8 [shape = 'u8[131072]{0}', space=vmem, size = 0x20000, scoped, tag = 'input window, operand 2, single buffered']
    #allocation9 [shape = 'u8[131072]{0}', space=vmem, size = 0x20000, scoped, tag = 'output window, operand 0, single buffered']
    %9 = vsyncpa [#allocation4], 0
    %10 = vsyncpa [#allocation7], 0
    %11 = vsyncpa [#allocation5], 0
    // Predicated region
    $region2: #{tpu_custom_call.1} parent=1 // pred_check
      _
    $region3: #{tpu_custom_call.1} parent=1 // pred_check_branch
      %13 = sbr.rel (0) target = $region5
    $region4: #{tpu_custom_call.1} parent=1 // pred_region
      %s15 = ssub.s32 2048, 2048
      %16 = vsyncadd [#allocation4], %s15
      %s17 = sshll.u32 [#allocation3], 4
      %s18 = int_to_ptr.vmem [resolvable:$true] %s17
      %23 = dma.hbm_to_vmem [thread:$0]  %s0, 2048, %s18, [#allocation4], 64, 64, 4
    $region5: #{tpu_custom_call.1} parent=1 // pred_fallthru
      _
    // Predicated region
    $region6: #{tpu_custom_call.1} parent=1 // pred_check
      _
    $region7: #{tpu_custom_call.1} parent=1 // pred_check_branch
      %25 = sbr.rel (0) target = $region9
    $region8: #{tpu_custom_call.1} parent=1 // pred_region
      %s27 = ssub.s32 1024, 1024
      %28 = vsyncadd [#allocation7], %s27
      %s29 = sshll.u32 [#allocation6], 4
      %s30 = int_to_ptr.vmem [resolvable:$true] %s29
      %35 = dma.hbm_to_vmem [thread:$0]  %s1, 1024, %s30, [#allocation7], 64, 64, 4
    $region9: #{tpu_custom_call.1} parent=1 // pred_fallthru
      _
    // Predicated region
    $region10: #{tpu_custom_call.1} parent=1 // pred_check
      _
    $region11: #{tpu_custom_call.1} parent=1 // pred_check_branch
      %37 = sbr.rel (0) target = $region13
    $region12: #{tpu_custom_call.1} parent=1 // pred_region
      %s39 = ssub.s32 4096, 4096
      %40 = vsyncadd [#allocation7], %s39
      %s41 = sshll.u32 [#allocation8], 4
      %s42 = int_to_ptr.vmem [resolvable:$true] %s41
      %47 = dma.hbm_to_vmem [thread:$0]  %s2, 4096, %s42, [#allocation7], 128, 128, 8
    $region13: #{tpu_custom_call.1} parent=1 // pred_fallthru
      _
    // Predicated region
    $region14: #{tpu_custom_call.1} parent=1 // pred_check
      _
    $region15: #{tpu_custom_call.1} parent=1 // pred_check_branch
      %49 = sbr.rel (0) target = $region17
    $region16: #{tpu_custom_call.1} parent=1 // pred_region
      _
    $region17: #{tpu_custom_call.1} parent=1 // pred_fallthru
      _
    // Predicated region
    $region18: #{tpu_custom_call.1} parent=1 // pred_check
      _
    $region19: #{tpu_custom_call.1} parent=1 // pred_check_branch
      %51 = sbr.rel (0) target = $region21
    $region20: #{tpu_custom_call.1} parent=1 // pred_region
      %52 = dma.done [#allocation4], 2048
    $region21: #{tpu_custom_call.1} parent=1 // pred_fallthru
      _
    // Predicated region
    $region22: #{tpu_custom_call.1} parent=1 // pred_check
      _
    $region23: #{tpu_custom_call.1} parent=1 // pred_check_branch
      %54 = sbr.rel (0) target = $region25
    $region24: #{tpu_custom_call.1} parent=1 // pred_region
      %55 = dma.done [#allocation7], 1024
    $region25: #{tpu_custom_call.1} parent=1 // pred_fallthru
      _
    // Predicated region
    $region26: #{tpu_custom_call.1} parent=1 // pred_check
      _
    $region27: #{tpu_custom_call.1} parent=1 // pred_check_branch
      %57 = sbr.rel (0) target = $region29
    $region28: #{tpu_custom_call.1} parent=1 // pred_region
      %58 = dma.done [#allocation7], 4096
    $region29: #{tpu_custom_call.1} parent=1 // pred_fallthru
      _
    %v60 = vld [vmem:[#allocation3] sm:$0xf]
    %v61 = vld [vmem:[#allocation3 + $0x4] sm:$0xf]
    %v62 = vld [vmem:[#allocation3 + $0x8] sm:$0xf]
    %v63 = vld [vmem:[#allocation3 + $0xc] sm:$0xf]
    %v64 = vld [vmem:[#allocation3 + $0x10] sm:$0xf]
    %v65 = vld [vmem:[#allocation3 + $0x14] sm:$0xf]
    %v66 = vld [vmem:[#allocation3 + $0x18] sm:$0xf]
    %v67 = vld [vmem:[#allocation3 + $0x1c] sm:$0xf]
    %v68 = vld [vmem:[#allocation3 + $0x20] sm:$0xf]
    %v69 = vld [vmem:[#allocation3 + $0x24] sm:$0xf]
    %v70 = vld [vmem:[#allocation3 + $0x28] sm:$0xf]
    %v71 = vld [vmem:[#allocation3 + $0x2c] sm:$0xf]
    %v72 = vld [vmem:[#allocation3 + $0x30] sm:$0xf]
    %v73 = vld [vmem:[#allocation3 + $0x34] sm:$0xf]
    %v74 = vld [vmem:[#allocation3 + $0x38] sm:$0xf]
    %v75 = vld [vmem:[#allocation3 + $0x3c] sm:$0xf]
    %v76 = vld [vmem:[#allocation3 + $0x40] sm:$0xf]
    %v77 = vld [vmem:[#allocation3 + $0x44] sm:$0xf]
    %v78 = vld [vmem:[#allocation3 + $0x48] sm:$0xf]
    %v79 = vld [vmem:[#allocation3 + $0x4c] sm:$0xf]
    %v80 = vld [vmem:[#allocation3 + $0x50] sm:$0xf]
    %v81 = vld [vmem:[#allocation3 + $0x54] sm:$0xf]
    %v82 = vld [vmem:[#allocation3 + $0x58] sm:$0xf]
    %v83 = vld [vmem:[#allocation3 + $0x5c] sm:$0xf]
    %v84 = vld [vmem:[#allocation3 + $0x60] sm:$0xf]
    %v85 = vld [vmem:[#allocation3 + $0x64] sm:$0xf]
    %v86 = vld [vmem:[#allocation3 + $0x68] sm:$0xf]
    %v87 = vld [vmem:[#allocation3 + $0x6c] sm:$0xf]
    %v88 = vld [vmem:[#allocation3 + $0x70] sm:$0xf]
    %v89 = vld [vmem:[#allocation3 + $0x74] sm:$0xf]
    %v90 = vld [vmem:[#allocation3 + $0x78] sm:$0xf]
    %v91 = vld [vmem:[#allocation3 + $0x7c] sm:$0xf]
    %v92 = vld [vmem:[#allocation6] sm:$0xf]
    %v93 = vld [vmem:[#allocation6 + $0x4] sm:$0xf]
    %v94 = vld [vmem:[#allocation6 + $0x8] sm:$0xf]
    %v95 = vld [vmem:[#allocation6 + $0xc] sm:$0xf]
    %v96 = vld [vmem:[#allocation6 + $0x10] sm:$0xf]
    %v97 = vld [vmem:[#allocation6 + $0x14] sm:$0xf]
    %v98 = vld [vmem:[#allocation6 + $0x18] sm:$0xf]
    %v99 = vld [vmem:[#allocation6 + $0x1c] sm:$0xf]
    %v100 = vld [vmem:[#allocation6 + $0x20] sm:$0xf]
    %v101 = vld [vmem:[#allocation6 + $0x24] sm:$0xf]
    %v102 = vld [vmem:[#allocation6 + $0x28] sm:$0xf]
    %v103 = vld [vmem:[#allocation6 + $0x2c] sm:$0xf]
    %v104 = vld [vmem:[#allocation6 + $0x30] sm:$0xf]
    %v105 = vld [vmem:[#allocation6 + $0x34] sm:$0xf]
    %v106 = vld [vmem:[#allocation6 + $0x38] sm:$0xf]
    %v107 = vld [vmem:[#allocation6 + $0x3c] sm:$0xf]
    %v140 = vunpack.c.l.b16 %v60
    %v141 = vunpack.c.l.b16 %v61
    %v142 = vunpack.c.l.b16 %v62
    %v143 = vunpack.c.l.b16 %v63
    %v144 = vunpack.c.l.b16 %v64
    %v145 = vunpack.c.l.b16 %v65
    %v146 = vunpack.c.l.b16 %v66
    %v147 = vunpack.c.l.b16 %v67
    %v148 = vunpack.c.l.b16 %v68
    %v149 = vunpack.c.l.b16 %v69
    %v150 = vunpack.c.l.b16 %v70
    %v151 = vunpack.c.l.b16 %v71
    %v152 = vunpack.c.l.b16 %v72
    %v153 = vunpack.c.l.b16 %v73
    %v154 = vunpack.c.l.b16 %v74
    %v155 = vunpack.c.l.b16 %v75
    %v156 = vunpack.c.l.b16 %v76
    %v157 = vunpack.c.l.b16 %v77
    %v158 = vunpack.c.l.b16 %v78
    %v159 = vunpack.c.l.b16 %v79
    %v160 = vunpack.c.l.b16 %v80
    %v161 = vunpack.c.l.b16 %v81
    %v162 = vunpack.c.l.b16 %v82
    %v163 = vunpack.c.l.b16 %v83
    %v164 = vunpack.c.l.b16 %v84
    %v165 = vunpack.c.l.b16 %v85
    %v166 = vunpack.c.l.b16 %v86
    %v167 = vunpack.c.l.b16 %v87
    %v168 = vunpack.c.l.b16 %v88
    %v169 = vunpack.c.l.b16 %v89
    %v170 = vunpack.c.l.b16 %v90
    %v171 = vunpack.c.l.b16 %v91
    %v172 = vpack.c.b16 %v141, %v140
    %v173 = vpack.c.b16 %v143, %v142
    %v174 = vpack.c.b16 %v145, %v144
    %v175 = vpack.c.b16 %v147, %v146
    %v176 = vpack.c.b16 %v149, %v148
    %v177 = vpack.c.b16 %v151, %v150
    %v178 = vpack.c.b16 %v153, %v152
    %v179 = vpack.c.b16 %v155, %v154
    %v180 = vpack.c.b16 %v157, %v156
    %v181 = vpack.c.b16 %v159, %v158
    %v182 = vpack.c.b16 %v161, %v160
    %v183 = vpack.c.b16 %v163, %v162
    %v184 = vpack.c.b16 %v165, %v164
    %v185 = vpack.c.b16 %v167, %v166
    %v186 = vpack.c.b16 %v169, %v168
    %v187 = vpack.c.b16 %v171, %v170
    %v220 = vunpack.c.l.b16 %v92
    %v221 = vunpack.c.l.b16 %v93
    %v222 = vunpack.c.l.b16 %v94
    %v223 = vunpack.c.l.b16 %v95
    %v224 = vunpack.c.l.b16 %v96
    %v225 = vunpack.c.l.b16 %v97
    %v226 = vunpack.c.l.b16 %v98
    %v227 = vunpack.c.l.b16 %v99
    %v228 = vunpack.c.l.b16 %v100
    %v229 = vunpack.c.l.b16 %v101
    %v230 = vunpack.c.l.b16 %v102
    %v231 = vunpack.c.l.b16 %v103
    %v232 = vunpack.c.l.b16 %v104
    %v233 = vunpack.c.l.b16 %v105
    %v234 = vunpack.c.l.b16 %v106
    %v235 = vunpack.c.l.b16 %v107
    %v236 = vpack.c.b16 %v221, %v220
    %v237 = vpack.c.b16 %v223, %v222
    %v238 = vpack.c.b16 %v225, %v224
    %v239 = vpack.c.b16 %v227, %v226
    %v240 = vpack.c.b16 %v229, %v228
    %v241 = vpack.c.b16 %v231, %v230
    %v242 = vpack.c.b16 %v233, %v232
    %v243 = vpack.c.b16 %v235, %v234
    %252 = vmatprep.subr.bf16.mxu0 0
    %253 = vmatpush1.bf16.msra.mxu0 %v236
    %254 = vmatprep.subr.bf16.mxu0 0
    %255 = vmatpush1.bf16.msra.mxu0 %v237
    %256 = vmatprep.subr.bf16.mxu0 0
    %257 = vmatpush1.bf16.msra.mxu0 %v238
    %258 = vmatprep.subr.bf16.mxu0 0
    %259 = vmatpush1.bf16.msra.mxu0 %v239
    %260 = vmatprep.subr.bf16.mxu0 0
    %261 = vmatpush1.bf16.msra.mxu0 %v240
    %262 = vmatprep.subr.bf16.mxu0 0
    %263 = vmatpush1.bf16.msra.mxu0 %v241
    %264 = vmatprep.subr.bf16.mxu0 0
    %265 = vmatpush1.bf16.msra.mxu0 %v242
    %266 = vmatprep.subr.bf16.mxu0 0
    %267 = vmatpush1.bf16.msra.mxu0 %v243
    %268 = vmatprep.subr.bf16.mxu0 0
    %269 = vmatpush1.bf16.msra.mxu0 0
    %270 = vmatprep.subr.bf16.mxu0 0
    %271 = vmatpush1.bf16.msra.mxu0 0
    %272 = vmatprep.subr.bf16.mxu0 0
    %273 = vmatpush1.bf16.msra.mxu0 0
    %274 = vmatprep.subr.bf16.mxu0 0
    %275 = vmatpush1.bf16.msra.mxu0 0
    %276 = vmatprep.subr.bf16.mxu0 0
    %277 = vmatpush1.bf16.msra.mxu0 0
    %278 = vmatprep.subr.bf16.mxu0 0
    %279 = vmatpush1.bf16.msra.mxu0 0
    %280 = vmatprep.subr.bf16.mxu0 0
    %281 = vmatpush1.bf16.msra.mxu0 0
    %282 = vmatprep.subr.bf16.mxu0 0
    %283 = vmatpush1.bf16.msra.mxu0 0
    %284 = vmatprep.mubr.bf16.mxu0 0
    %285 = vmatmul.mubr.bf16.gmra.mrb[0].mxu0 %v172
    %v286 = vpop.f32.mrb[0].mxu0
    %v287 = vadd.f32 0.0, %v286
    %v288 = vpop.f32.mrb[0].mxu0
    %v289 = vpop.f32.mrb[0].mxu0
    %v290 = vadd.f32 0.0, %v289
    %v291 = vpop.f32.mrb[0].mxu0
    %292 = vmatprep.mubr.bf16.mxu0 0
    %293 = vmatmul.mubr.bf16.gmra.mrb[0].mxu0 %v173
    %v294 = vpop.f32.mrb[0].mxu0
    %v295 = vadd.f32 0.0, %v294
    %v296 = vpop.f32.mrb[0].mxu0
    %v297 = vpop.f32.mrb[0].mxu0
    %v298 = vadd.f32 0.0, %v297
    %v299 = vpop.f32.mrb[0].mxu0
    %300 = vmatprep.mubr.bf16.mxu0 0
    %301 = vmatmul.mubr.bf16.gmra.mrb[0].mxu0 %v174
    %v302 = vpop.f32.mrb[0].mxu0
    %v303 = vadd.f32 0.0, %v302
    %v304 = vpop.f32.mrb[0].mxu0
    %v305 = vpop.f32.mrb[0].mxu0
    %v306 = vadd.f32 0.0, %v305
    %v307 = vpop.f32.mrb[0].mxu0
    %308 = vmatprep.mubr.bf16.mxu0 0
    %309 = vmatmul.mubr.bf16.gmra.mrb[0].mxu0 %v175
    %v310 = vpop.f32.mrb[0].mxu0
    %v311 = vadd.f32 0.0, %v310
    %v312 = vpop.f32.mrb[0].mxu0
    %v313 = vpop.f32.mrb[0].mxu0
    %v314 = vadd.f32 0.0, %v313
    %v315 = vpop.f32.mrb[0].mxu0
    %316 = vmatprep.mubr.bf16.mxu0 0
    %317 = vmatmul.mubr.bf16.gmra.mrb[0].mxu0 %v176
    %v318 = vpop.f32.mrb[0].mxu0
    %v319 = vadd.f32 0.0, %v318
    %v320 = vpop.f32.mrb[0].mxu0
    %v321 = vpop.f32.mrb[0].mxu0
    %v322 = vadd.f32 0.0, %v321
    %v323 = vpop.f32.mrb[0].mxu0
    %324 = vmatprep.mubr.bf16.mxu0 0
    %325 = vmatmul.mubr.bf16.gmra.mrb[0].mxu0 %v177
    %v326 = vpop.f32.mrb[0].mxu0
    %v327 = vadd.f32 0.0, %v326
    %v328 = vpop.f32.mrb[0].mxu0
    %v329 = vpop.f32.mrb[0].mxu0
    %v330 = vadd.f32 0.0, %v329
    %v331 = vpop.f32.mrb[0].mxu0
    %332 = vmatprep.mubr.bf16.mxu0 0
    %333 = vmatmul.mubr.bf16.gmra.mrb[0].mxu0 %v178
    %v334 = vpop.f32.mrb[0].mxu0
    %v335 = vadd.f32 0.0, %v334
    %v336 = vpop.f32.mrb[0].mxu0
    %v337 = vpop.f32.mrb[0].mxu0
    %v338 = vadd.f32 0.0, %v337
    %v339 = vpop.f32.mrb[0].mxu0
    %340 = vmatprep.mubr.bf16.mxu0 0
    %341 = vmatmul.mubr.bf16.gmra.mrb[0].mxu0 %v179
    %v342 = vpop.f32.mrb[0].mxu0
    %v343 = vadd.f32 0.0, %v342
    %v344 = vpop.f32.mrb[0].mxu0
    %v345 = vpop.f32.mrb[0].mxu0
    %v346 = vadd.f32 0.0, %v345
    %v347 = vpop.f32.mrb[0].mxu0
    %348 = vmatprep.mubr.bf16.mxu0 0
    %349 = vmatmul.mubr.bf16.gmra.mrb[0].mxu0 %v180
    %v350 = vpop.f32.mrb[0].mxu0
    %v351 = vadd.f32 0.0, %v350
    %v352 = vpop.f32.mrb[0].mxu0
    %v353 = vpop.f32.mrb[0].mxu0
    %v354 = vadd.f32 0.0, %v353
    %v355 = vpop.f32.mrb[0].mxu0
    %356 = vmatprep.mubr.bf16.mxu0 0
    %357 = vmatmul.mubr.bf16.gmra.mrb[0].mxu0 %v181
    %v358 = vpop.f32.mrb[0].mxu0
    %v359 = vadd.f32 0.0, %v358
    %v360 = vpop.f32.mrb[0].mxu0
    %v361 = vpop.f32.mrb[0].mxu0
    %v362 = vadd.f32 0.0, %v361
    %v363 = vpop.f32.mrb[0].mxu0
    %364 = vmatprep.mubr.bf16.mxu0 0
    %365 = vmatmul.mubr.bf16.gmra.mrb[0].mxu0 %v182
    %v366 = vpop.f32.mrb[0].mxu0
    %v367 = vadd.f32 0.0, %v366
    %v368 = vpop.f32.mrb[0].mxu0
    %v369 = vpop.f32.mrb[0].mxu0
    %v370 = vadd.f32 0.0, %v369
    %v371 = vpop.f32.mrb[0].mxu0
    %372 = vmatprep.mubr.bf16.mxu0 0
    %373 = vmatmul.mubr.bf16.gmra.mrb[0].mxu0 %v183
    %v374 = vpop.f32.mrb[0].mxu0
    %v375 = vadd.f32 0.0, %v374
    %v376 = vpop.f32.mrb[0].mxu0
    %v377 = vpop.f32.mrb[0].mxu0
    %v378 = vadd.f32 0.0, %v377
    %v379 = vpop.f32.mrb[0].mxu0
    %380 = vmatprep.mubr.bf16.mxu0 0
    %381 = vmatmul.mubr.bf16.gmra.mrb[0].mxu0 %v184
    %v382 = vpop.f32.mrb[0].mxu0
    %v383 = vadd.f32 0.0, %v382
    %v384 = vpop.f32.mrb[0].mxu0
    %v385 = vpop.f32.mrb[0].mxu0
    %v386 = vadd.f32 0.0, %v385
    %v387 = vpop.f32.mrb[0].mxu0
    %388 = vmatprep.mubr.bf16.mxu0 0
    %389 = vmatmul.mubr.bf16.gmra.mrb[0].mxu0 %v185
    %v390 = vpop.f32.mrb[0].mxu0
    %v391 = vadd.f32 0.0, %v390
    %v392 = vpop.f32.mrb[0].mxu0
    %v393 = vpop.f32.mrb[0].mxu0
    %v394 = vadd.f32 0.0, %v393
    %v395 = vpop.f32.mrb[0].mxu0
    %396 = vmatprep.mubr.bf16.mxu0 0
    %397 = vmatmul.mubr.bf16.gmra.mrb[0].mxu0 %v186
    %v398 = vpop.f32.mrb[0].mxu0
    %v399 = vadd.f32 0.0, %v398
    %v400 = vpop.f32.mrb[0].mxu0
    %v401 = vpop.f32.mrb[0].mxu0
    %v402 = vadd.f32 0.0, %v401
    %v403 = vpop.f32.mrb[0].mxu0
    %404 = vmatprep.mubr.bf16.mxu0 0
    %405 = vmatmul.mubr.bf16.gmra.mrb[0].mxu0 %v187
    %v406 = vpop.f32.mrb[0].mxu0
    %v407 = vadd.f32 0.0, %v406
    %v408 = vpop.f32.mrb[0].mxu0
    %v409 = vpop.f32.mrb[0].mxu0
    %v410 = vadd.f32 0.0, %v409
    %v411 = vpop.f32.mrb[0].mxu0
    %412 = vdwg.mxu0
    %413 = vst [vmem:[#allocation2] sm:$0xff] %v287
    %414 = vst [vmem:[#allocation2 + $0x8] sm:$0xff] %v290
    %415 = vst [vmem:[#allocation2 + $0x10] sm:$0xff] %v295
    %416 = vst [vmem:[#allocation2 + $0x18] sm:$0xff] %v298
    %417 = vst [vmem:[#allocation2 + $0x20] sm:$0xff] %v303
    %418 = vst [vmem:[#allocation2 + $0x28] sm:$0xff] %v306
    %419 = vst [vmem:[#allocation2 + $0x30] sm:$0xff] %v311
    %420 = vst [vmem:[#allocation2 + $0x38] sm:$0xff] %v314
    %421 = vst [vmem:[#allocation2 + $0x40] sm:$0xff] %v319
    %422 = vst [vmem:[#allocation2 + $0x48] sm:$0xff] %v322
    %423 = vst [vmem:[#allocation2 + $0x50] sm:$0xff] %v327
    %424 = vst [vmem:[#allocation2 + $0x58] sm:$0xff] %v330
    %425 = vst [vmem:[#allocation2 + $0x60] sm:$0xff] %v335
    %426 = vst [vmem:[#allocation2 + $0x68] sm:$0xff] %v338
    %427 = vst [vmem:[#allocation2 + $0x70] sm:$0xff] %v343
    %428 = vst [vmem:[#allocation2 + $0x78] sm:$0xff] %v346
    %429 = vst [vmem:[#allocation2 + $0x80] sm:$0xff] %v351
    %430 = vst [vmem:[#allocation2 + $0x88] sm:$0xff] %v354
    %431 = vst [vmem:[#allocation2 + $0x90] sm:$0xff] %v359
    %432 = vst [vmem:[#allocation2 + $0x98] sm:$0xff] %v362
    %433 = vst [vmem:[#allocation2 + $0xa0] sm:$0xff] %v367
    %434 = vst [vmem:[#allocation2 + $0xa8] sm:$0xff] %v370
    %435 = vst [vmem:[#allocation2 + $0xb0] sm:$0xff] %v375
    %436 = vst [vmem:[#allocation2 + $0xb8] sm:$0xff] %v378
    %437 = vst [vmem:[#allocation2 + $0xc0] sm:$0xff] %v383
    %438 = vst [vmem:[#allocation2 + $0xc8] sm:$0xff] %v386
    %439 = vst [vmem:[#allocation2 + $0xd0] sm:$0xff] %v391
    %440 = vst [vmem:[#allocation2 + $0xd8] sm:$0xff] %v394
    %441 = vst [vmem:[#allocation2 + $0xe0] sm:$0xff] %v399
    %442 = vst [vmem:[#allocation2 + $0xe8] sm:$0xff] %v402
    %443 = vst [vmem:[#allocation2 + $0xf0] sm:$0xff] %v407
    %444 = vst [vmem:[#allocation2 + $0xf8] sm:$0xff] %v410
    %v445 = vld [vmem:[#allocation8] sm:$0xff]
    %v446 = vld [vmem:[#allocation8 + $0x8] sm:$0xff]
    %v447 = vld [vmem:[#allocation8 + $0x10] sm:$0xff]
    %v448 = vld [vmem:[#allocation8 + $0x18] sm:$0xff]
    %v449 = vld [vmem:[#allocation8 + $0x20] sm:$0xff]
    %v450 = vld [vmem:[#allocation8 + $0x28] sm:$0xff]
    %v451 = vld [vmem:[#allocation8 + $0x30] sm:$0xff]
    %v452 = vld [vmem:[#allocation8 + $0x38] sm:$0xff]
    %v453 = vld [vmem:[#allocation8 + $0x40] sm:$0xff]
    %v454 = vld [vmem:[#allocation8 + $0x48] sm:$0xff]
    %v455 = vld [vmem:[#allocation8 + $0x50] sm:$0xff]
    %v456 = vld [vmem:[#allocation8 + $0x58] sm:$0xff]
    %v457 = vld [vmem:[#allocation8 + $0x60] sm:$0xff]
    %v458 = vld [vmem:[#allocation8 + $0x68] sm:$0xff]
    %v459 = vld [vmem:[#allocation8 + $0x70] sm:$0xff]
    %v460 = vld [vmem:[#allocation8 + $0x78] sm:$0xff]
    %v461 = vld [vmem:[#allocation8 + $0x80] sm:$0xff]
    %v462 = vld [vmem:[#allocation8 + $0x88] sm:$0xff]
    %v463 = vld [vmem:[#allocation8 + $0x90] sm:$0xff]
    %v464 = vld [vmem:[#allocation8 + $0x98] sm:$0xff]
    %v465 = vld [vmem:[#allocation8 + $0xa0] sm:$0xff]
    %v466 = vld [vmem:[#allocation8 + $0xa8] sm:$0xff]
    %v467 = vld [vmem:[#allocation8 + $0xb0] sm:$0xff]
    %v468 = vld [vmem:[#allocation8 + $0xb8] sm:$0xff]
    %v469 = vld [vmem:[#allocation8 + $0xc0] sm:$0xff]
    %v470 = vld [vmem:[#allocation8 + $0xc8] sm:$0xff]
    %v471 = vld [vmem:[#allocation8 + $0xd0] sm:$0xff]
    %v472 = vld [vmem:[#allocation8 + $0xd8] sm:$0xff]
    %v473 = vld [vmem:[#allocation8 + $0xe0] sm:$0xff]
    %v474 = vld [vmem:[#allocation8 + $0xe8] sm:$0xff]
    %v475 = vld [vmem:[#allocation8 + $0xf0] sm:$0xff]
    %v476 = vld [vmem:[#allocation8 + $0xf8] sm:$0xff]
    %v477 = vld [vmem:[#allocation2] sm:$0xff]
    %v478 = vld [vmem:[#allocation2 + $0x8] sm:$0xff]
    %v479 = vld [vmem:[#allocation2 + $0x10] sm:$0xff]
    %v480 = vld [vmem:[#allocation2 + $0x18] sm:$0xff]
    %v481 = vld [vmem:[#allocation2 + $0x20] sm:$0xff]
    %v482 = vld [vmem:[#allocation2 + $0x28] sm:$0xff]
    %v483 = vld [vmem:[#allocation2 + $0x30] sm:$0xff]
    %v484 = vld [vmem:[#allocation2 + $0x38] sm:$0xff]
    %v485 = vld [vmem:[#allocation2 + $0x40] sm:$0xff]
    %v486 = vld [vmem:[#allocation2 + $0x48] sm:$0xff]
    %v487 = vld [vmem:[#allocation2 + $0x50] sm:$0xff]
    %v488 = vld [vmem:[#allocation2 + $0x58] sm:$0xff]
    %v489 = vld [vmem:[#allocation2 + $0x60] sm:$0xff]
    %v490 = vld [vmem:[#allocation2 + $0x68] sm:$0xff]
    %v491 = vld [vmem:[#allocation2 + $0x70] sm:$0xff]
    %v492 = vld [vmem:[#allocation2 + $0x78] sm:$0xff]
    %v493 = vld [vmem:[#allocation2 + $0x80] sm:$0xff]
    %v494 = vld [vmem:[#allocation2 + $0x88] sm:$0xff]
    %v495 = vld [vmem:[#allocation2 + $0x90] sm:$0xff]
    %v496 = vld [vmem:[#allocation2 + $0x98] sm:$0xff]
    %v497 = vld [vmem:[#allocation2 + $0xa0] sm:$0xff]
    %v498 = vld [vmem:[#allocation2 + $0xa8] sm:$0xff]
    %v499 = vld [vmem:[#allocation2 + $0xb0] sm:$0xff]
    %v500 = vld [vmem:[#allocation2 + $0xb8] sm:$0xff]
    %v501 = vld [vmem:[#allocation2 + $0xc0] sm:$0xff]
    %v502 = vld [vmem:[#allocation2 + $0xc8] sm:$0xff]
    %v503 = vld [vmem:[#allocation2 + $0xd0] sm:$0xff]
    %v504 = vld [vmem:[#allocation2 + $0xd8] sm:$0xff]
    %v505 = vld [vmem:[#allocation2 + $0xe0] sm:$0xff]
    %v506 = vld [vmem:[#allocation2 + $0xe8] sm:$0xff]
    %v507 = vld [vmem:[#allocation2 + $0xf0] sm:$0xff]
    %v508 = vld [vmem:[#allocation2 + $0xf8] sm:$0xff]
    %v509 = vpack.c.bf16 %v478, %v477
    %v510 = vpack.c.bf16 %v480, %v479
    %v511 = vpack.c.bf16 %v482, %v481
    %v512 = vpack.c.bf16 %v484, %v483
    %v513 = vpack.c.bf16 %v486, %v485
    %v514 = vpack.c.bf16 %v488, %v487
    %v515 = vpack.c.bf16 %v490, %v489
    %v516 = vpack.c.bf16 %v492, %v491
    %v517 = vpack.c.bf16 %v494, %v493
    %v518 = vpack.c.bf16 %v496, %v495
    %v519 = vpack.c.bf16 %v498, %v497
    %v520 = vpack.c.bf16 %v500, %v499
    %v521 = vpack.c.bf16 %v502, %v501
    %v522 = vpack.c.bf16 %v504, %v503
    %v523 = vpack.c.bf16 %v506, %v505
    %v524 = vpack.c.bf16 %v508, %v507
    %v557 = vunpack.c.l.b16 %v445
    %v558 = vunpack.c.h.b16 %v445
    %v559 = vunpack.c.l.b16 %v446
    %v560 = vunpack.c.h.b16 %v446
    %v561 = vunpack.c.l.b16 %v447
    %v562 = vunpack.c.h.b16 %v447
    %v563 = vunpack.c.l.b16 %v448
    %v564 = vunpack.c.h.b16 %v448
    %v565 = vunpack.c.l.b16 %v449
    %v566 = vunpack.c.h.b16 %v449
    %v567 = vunpack.c.l.b16 %v450
    %v568 = vunpack.c.h.b16 %v450
    %v569 = vunpack.c.l.b16 %v451
    %v570 = vunpack.c.h.b16 %v451
    %v571 = vunpack.c.l.b16 %v452
    %v572 = vunpack.c.h.b16 %v452
    %v573 = vunpack.c.l.b16 %v453
    %v574 = vunpack.c.h.b16 %v453
    %v575 = vunpack.c.l.b16 %v454
    %v576 = vunpack.c.h.b16 %v454
    %v577 = vunpack.c.l.b16 %v455
    %v578 = vunpack.c.h.b16 %v455
    %v579 = vunpack.c.l.b16 %v456
    %v580 = vunpack.c.h.b16 %v456
    %v581 = vunpack.c.l.b16 %v457
    %v582 = vunpack.c.h.b16 %v457
    %v583 = vunpack.c.l.b16 %v458
    %v584 = vunpack.c.h.b16 %v458
    %v585 = vunpack.c.l.b16 %v459
    %v586 = vunpack.c.h.b16 %v459
    %v587 = vunpack.c.l.b16 %v460
    %v588 = vunpack.c.h.b16 %v460
    %v589 = vunpack.c.l.b16 %v461
    %v590 = vunpack.c.h.b16 %v461
    %v591 = vunpack.c.l.b16 %v462
    %v592 = vunpack.c.h.b16 %v462
    %v593 = vunpack.c.l.b16 %v463
    %v594 = vunpack.c.h.b16 %v463
    %v595 = vunpack.c.l.b16 %v464
    %v596 = vunpack.c.h.b16 %v464
    %v597 = vunpack.c.l.b16 %v465
    %v598 = vunpack.c.h.b16 %v465
    %v599 = vunpack.c.l.b16 %v466
    %v600 = vunpack.c.h.b16 %v466
    %v601 = vunpack.c.l.b16 %v467
    %v602 = vunpack.c.h.b16 %v467
    %v603 = vunpack.c.l.b16 %v468
    %v604 = vunpack.c.h.b16 %v468
    %v605 = vunpack.c.l.b16 %v469
    %v606 = vunpack.c.h.b16 %v469
    %v607 = vunpack.c.l.b16 %v470
    %v608 = vunpack.c.h.b16 %v470
    %v609 = vunpack.c.l.b16 %v471
    %v610 = vunpack.c.h.b16 %v471
    %v611 = vunpack.c.l.b16 %v472
    %v612 = vunpack.c.h.b16 %v472
    %v613 = vunpack.c.l.b16 %v473
    %v614 = vunpack.c.h.b16 %v473
    %v615 = vunpack.c.l.b16 %v474
    %v616 = vunpack.c.h.b16 %v474
    %v617 = vunpack.c.l.b16 %v475
    %v618 = vunpack.c.h.b16 %v475
    %v619 = vunpack.c.l.b16 %v476
    %v620 = vunpack.c.h.b16 %v476
    %v621 = vpack.c.b16 %v559, %v557
    %v622 = vpack.c.b16 %v560, %v558
    %v623 = vpack.c.b16 %v563, %v561
    %v624 = vpack.c.b16 %v564, %v562
    %v625 = vpack.c.b16 %v567, %v565
    %v626 = vpack.c.b16 %v568, %v566
    %v627 = vpack.c.b16 %v571, %v569
    %v628 = vpack.c.b16 %v572, %v570
    %v629 = vpack.c.b16 %v575, %v573
    %v630 = vpack.c.b16 %v576, %v574
    %v631 = vpack.c.b16 %v579, %v577
    %v632 = vpack.c.b16 %v580, %v578
    %v633 = vpack.c.b16 %v583, %v581
    %v634 = vpack.c.b16 %v584, %v582
    %v635 = vpack.c.b16 %v587, %v585
    %v636 = vpack.c.b16 %v588, %v586
    %v637 = vpack.c.b16 %v591, %v589
    %v638 = vpack.c.b16 %v592, %v590
    %v639 = vpack.c.b16 %v595, %v593
    %v640 = vpack.c.b16 %v596, %v594
    %v641 = vpack.c.b16 %v599, %v597
    %v642 = vpack.c.b16 %v600, %v598
    %v643 = vpack.c.b16 %v603, %v601
    %v644 = vpack.c.b16 %v604, %v602
    %v645 = vpack.c.b16 %v607, %v605
    %v646 = vpack.c.b16 %v608, %v606
    %v647 = vpack.c.b16 %v611, %v609
    %v648 = vpack.c.b16 %v612, %v610
    %v649 = vpack.c.b16 %v615, %v613
    %v650 = vpack.c.b16 %v616, %v614
    %v651 = vpack.c.b16 %v619, %v617
    %v652 = vpack.c.b16 %v620, %v618
    %685 = vmatprep.subr.bf16.mxu0 0
    %686 = vmatpush1.bf16.msra.mxu0 %v509
    %687 = vmatprep.subr.bf16.mxu0 0
    %688 = vmatpush1.bf16.msra.mxu0 %v510
    %689 = vmatprep.subr.bf16.mxu0 0
    %690 = vmatpush1.bf16.msra.mxu0 %v511
    %691 = vmatprep.subr.bf16.mxu0 0
    %692 = vmatpush1.bf16.msra.mxu0 %v512
    %693 = vmatprep.subr.bf16.mxu0 0
    %694 = vmatpush1.bf16.msra.mxu0 %v513
    %695 = vmatprep.subr.bf16.mxu0 0
    %696 = vmatpush1.bf16.msra.mxu0 %v514
    %697 = vmatprep.subr.bf16.mxu0 0
    %698 = vmatpush1.bf16.msra.mxu0 %v515
    %699 = vmatprep.subr.bf16.mxu0 0
    %700 = vmatpush1.bf16.msra.mxu0 %v516
    %701 = vmatprep.subr.bf16.mxu0 0
    %702 = vmatpush1.bf16.msra.mxu0 %v517
    %703 = vmatprep.subr.bf16.mxu0 0
    %704 = vmatpush1.bf16.msra.mxu0 %v518
    %705 = vmatprep.subr.bf16.mxu0 0
    %706 = vmatpush1.bf16.msra.mxu0 %v519
    %707 = vmatprep.subr.bf16.mxu0 0
    %708 = vmatpush1.bf16.msra.mxu0 %v520
    %709 = vmatprep.subr.bf16.mxu0 0
    %710 = vmatpush1.bf16.msra.mxu0 %v521
    %711 = vmatprep.subr.bf16.mxu0 0
    %712 = vmatpush1.bf16.msra.mxu0 %v522
    %713 = vmatprep.subr.bf16.mxu0 0
    %714 = vmatpush1.bf16.msra.mxu0 %v523
    %715 = vmatprep.subr.bf16.mxu0 0
    %716 = vmatpush1.bf16.msra.mxu0 %v524
    %717 = vmatprep.mubr.bf16.mxu0 %v622
    %718 = vmatmul.mubr.bf16.gmra.mrb[0].mxu0 %v621
    %v719 = vpop.f32.mrb[0].mxu0
    %v720 = vadd.f32 0.0, %v719
    %v721 = vpop.f32.mrb[0].mxu0
    %v722 = vpop.f32.mrb[0].mxu0
    %v723 = vadd.f32 0.0, %v722
    %v724 = vpop.f32.mrb[0].mxu0
    %725 = vmatprep.mubr.bf16.mxu0 %v624
    %726 = vmatmul.mubr.bf16.gmra.mrb[0].mxu0 %v623
    %v727 = vpop.f32.mrb[0].mxu0
    %v728 = vadd.f32 0.0, %v727
    %v729 = vpop.f32.mrb[0].mxu0
    %v730 = vpop.f32.mrb[0].mxu0
    %v731 = vadd.f32 0.0, %v730
    %v732 = vpop.f32.mrb[0].mxu0
    %733 = vmatprep.mubr.bf16.mxu0 %v626
    %734 = vmatmul.mubr.bf16.gmra.mrb[0].mxu0 %v625
    %v735 = vpop.f32.mrb[0].mxu0
    %v736 = vadd.f32 0.0, %v735
    %v737 = vpop.f32.mrb[0].mxu0
    %v738 = vpop.f32.mrb[0].mxu0
    %v739 = vadd.f32 0.0, %v738
    %v740 = vpop.f32.mrb[0].mxu0
    %741 = vmatprep.mubr.bf16.mxu0 %v628
    %742 = vmatmul.mubr.bf16.gmra.mrb[0].mxu0 %v627
    %v743 = vpop.f32.mrb[0].mxu0
    %v744 = vadd.f32 0.0, %v743
    %v745 = vpop.f32.mrb[0].mxu0
    %v746 = vpop.f32.mrb[0].mxu0
    %v747 = vadd.f32 0.0, %v746
    %v748 = vpop.f32.mrb[0].mxu0
    %749 = vmatprep.mubr.bf16.mxu0 %v630
    %750 = vmatmul.mubr.bf16.gmra.mrb[0].mxu0 %v629
    %v751 = vpop.f32.mrb[0].mxu0
    %v752 = vadd.f32 0.0, %v751
    %v753 = vpop.f32.mrb[0].mxu0
    %v754 = vpop.f32.mrb[0].mxu0
    %v755 = vadd.f32 0.0, %v754
    %v756 = vpop.f32.mrb[0].mxu0
    %757 = vmatprep.mubr.bf16.mxu0 %v632
    %758 = vmatmul.mubr.bf16.gmra.mrb[0].mxu0 %v631
    %v759 = vpop.f32.mrb[0].mxu0
    %v760 = vadd.f32 0.0, %v759
    %v761 = vpop.f32.mrb[0].mxu0
    %v762 = vpop.f32.mrb[0].mxu0
    %v763 = vadd.f32 0.0, %v762
    %v764 = vpop.f32.mrb[0].mxu0
    %765 = vmatprep.mubr.bf16.mxu0 %v634
    %766 = vmatmul.mubr.bf16.gmra.mrb[0].mxu0 %v633
    %v767 = vpop.f32.mrb[0].mxu0
    %v768 = vadd.f32 0.0, %v767
    %v769 = vpop.f32.mrb[0].mxu0
    %v770 = vpop.f32.mrb[0].mxu0
    %v771 = vadd.f32 0.0, %v770
    %v772 = vpop.f32.mrb[0].mxu0
    %773 = vmatprep.mubr.bf16.mxu0 %v636
    %774 = vmatmul.mubr.bf16.gmra.mrb[0].mxu0 %v635
    %v775 = vpop.f32.mrb[0].mxu0
    %v776 = vadd.f32 0.0, %v775
    %v777 = vpop.f32.mrb[0].mxu0
    %v778 = vpop.f32.mrb[0].mxu0
    %v779 = vadd.f32 0.0, %v778
    %v780 = vpop.f32.mrb[0].mxu0
    %781 = vmatprep.mubr.bf16.mxu0 %v638
    %782 = vmatmul.mubr.bf16.gmra.mrb[0].mxu0 %v637
    %v783 = vpop.f32.mrb[0].mxu0
    %v784 = vadd.f32 0.0, %v783
    %v785 = vpop.f32.mrb[0].mxu0
    %v786 = vpop.f32.mrb[0].mxu0
    %v787 = vadd.f32 0.0, %v786
    %v788 = vpop.f32.mrb[0].mxu0
    %789 = vmatprep.mubr.bf16.mxu0 %v640
    %790 = vmatmul.mubr.bf16.gmra.mrb[0].mxu0 %v639
    %v791 = vpop.f32.mrb[0].mxu0
    %v792 = vadd.f32 0.0, %v791
    %v793 = vpop.f32.mrb[0].mxu0
    %v794 = vpop.f32.mrb[0].mxu0
    %v795 = vadd.f32 0.0, %v794
    %v796 = vpop.f32.mrb[0].mxu0
    %797 = vmatprep.mubr.bf16.mxu0 %v642
    %798 = vmatmul.mubr.bf16.gmra.mrb[0].mxu0 %v641
    %v799 = vpop.f32.mrb[0].mxu0
    %v800 = vadd.f32 0.0, %v799
    %v801 = vpop.f32.mrb[0].mxu0
    %v802 = vpop.f32.mrb[0].mxu0
    %v803 = vadd.f32 0.0, %v802
    %v804 = vpop.f32.mrb[0].mxu0
    %805 = vmatprep.mubr.bf16.mxu0 %v644
    %806 = vmatmul.mubr.bf16.gmra.mrb[0].mxu0 %v643
    %v807 = vpop.f32.mrb[0].mxu0
    %v808 = vadd.f32 0.0, %v807
    %v809 = vpop.f32.mrb[0].mxu0
    %v810 = vpop.f32.mrb[0].mxu0
    %v811 = vadd.f32 0.0, %v810
    %v812 = vpop.f32.mrb[0].mxu0
    %813 = vmatprep.mubr.bf16.mxu0 %v646
    %814 = vmatmul.mubr.bf16.gmra.mrb[0].mxu0 %v645
    %v815 = vpop.f32.mrb[0].mxu0
    %v816 = vadd.f32 0.0, %v815
    %v817 = vpop.f32.mrb[0].mxu0
    %v818 = vpop.f32.mrb[0].mxu0
    %v819 = vadd.f32 0.0, %v818
    %v820 = vpop.f32.mrb[0].mxu0
    %821 = vmatprep.mubr.bf16.mxu0 %v648
    %822 = vmatmul.mubr.bf16.gmra.mrb[0].mxu0 %v647
    %v823 = vpop.f32.mrb[0].mxu0
    %v824 = vadd.f32 0.0, %v823
    %v825 = vpop.f32.mrb[0].mxu0
    %v826 = vpop.f32.mrb[0].mxu0
    %v827 = vadd.f32 0.0, %v826
    %v828 = vpop.f32.mrb[0].mxu0
    %829 = vmatprep.mubr.bf16.mxu0 %v650
    %830 = vmatmul.mubr.bf16.gmra.mrb[0].mxu0 %v649
    %v831 = vpop.f32.mrb[0].mxu0
    %v832 = vadd.f32 0.0, %v831
    %v833 = vpop.f32.mrb[0].mxu0
    %v834 = vpop.f32.mrb[0].mxu0
    %v835 = vadd.f32 0.0, %v834
    %v836 = vpop.f32.mrb[0].mxu0
    %837 = vmatprep.mubr.bf16.mxu0 %v652
    %838 = vmatmul.mubr.bf16.gmra.mrb[0].mxu0 %v651
    %v839 = vpop.f32.mrb[0].mxu0
    %v840 = vadd.f32 0.0, %v839
    %v841 = vpop.f32.mrb[0].mxu0
    %v842 = vpop.f32.mrb[0].mxu0
    %v843 = vadd.f32 0.0, %v842
    %v844 = vpop.f32.mrb[0].mxu0
    %845 = vdwg.mxu0
    %846 = vst [vmem:[#allocation2] sm:$0xff] %v720
    %847 = vst [vmem:[#allocation2 + $0x8] sm:$0xff] %v723
    %848 = vst [vmem:[#allocation2 + $0x10] sm:$0xff] %v728
    %849 = vst [vmem:[#allocation2 + $0x18] sm:$0xff] %v731
    %850 = vst [vmem:[#allocation2 + $0x20] sm:$0xff] %v736
    %851 = vst [vmem:[#allocation2 + $0x28] sm:$0xff] %v739
    %852 = vst [vmem:[#allocation2 + $0x30] sm:$0xff] %v744
    %853 = vst [vmem:[#allocation2 + $0x38] sm:$0xff] %v747
    %854 = vst [vmem:[#allocation2 + $0x40] sm:$0xff] %v752
    %855 = vst [vmem:[#allocation2 + $0x48] sm:$0xff] %v755
    %856 = vst [vmem:[#allocation2 + $0x50] sm:$0xff] %v760
    %857 = vst [vmem:[#allocation2 + $0x58] sm:$0xff] %v763
    %858 = vst [vmem:[#allocation2 + $0x60] sm:$0xff] %v768
    %859 = vst [vmem:[#allocation2 + $0x68] sm:$0xff] %v771
    %860 = vst [vmem:[#allocation2 + $0x70] sm:$0xff] %v776
    %861 = vst [vmem:[#allocation2 + $0x78] sm:$0xff] %v779
    %862 = vst [vmem:[#allocation2 + $0x80] sm:$0xff] %v784
    %863 = vst [vmem:[#allocation2 + $0x88] sm:$0xff] %v787
    %864 = vst [vmem:[#allocation2 + $0x90] sm:$0xff] %v792
    %865 = vst [vmem:[#allocation2 + $0x98] sm:$0xff] %v795
    %866 = vst [vmem:[#allocation2 + $0xa0] sm:$0xff] %v800
    %867 = vst [vmem:[#allocation2 + $0xa8] sm:$0xff] %v803
    %868 = vst [vmem:[#allocation2 + $0xb0] sm:$0xff] %v808
    %869 = vst [vmem:[#allocation2 + $0xb8] sm:$0xff] %v811
    %870 = vst [vmem:[#allocation2 + $0xc0] sm:$0xff] %v816
    %871 = vst [vmem:[#allocation2 + $0xc8] sm:$0xff] %v819
    %872 = vst [vmem:[#allocation2 + $0xd0] sm:$0xff] %v824
    %873 = vst [vmem:[#allocation2 + $0xd8] sm:$0xff] %v827
    %874 = vst [vmem:[#allocation2 + $0xe0] sm:$0xff] %v832
    %875 = vst [vmem:[#allocation2 + $0xe8] sm:$0xff] %v835
    %876 = vst [vmem:[#allocation2 + $0xf0] sm:$0xff] %v840
    %877 = vst [vmem:[#allocation2 + $0xf8] sm:$0xff] %v843
    %v878 = vld [vmem:[#allocation8] sm:$0xff]
    %v879 = vld [vmem:[#allocation8 + $0x8] sm:$0xff]
    %v880 = vld [vmem:[#allocation8 + $0x10] sm:$0xff]
    %v881 = vld [vmem:[#allocation8 + $0x18] sm:$0xff]
    %v882 = vld [vmem:[#allocation8 + $0x20] sm:$0xff]
    %v883 = vld [vmem:[#allocation8 + $0x28] sm:$0xff]
    %v884 = vld [vmem:[#allocation8 + $0x30] sm:$0xff]
    %v885 = vld [vmem:[#allocation8 + $0x38] sm:$0xff]
    %v886 = vld [vmem:[#allocation8 + $0x40] sm:$0xff]
    %v887 = vld [vmem:[#allocation8 + $0x48] sm:$0xff]
    %v888 = vld [vmem:[#allocation8 + $0x50] sm:$0xff]
    %v889 = vld [vmem:[#allocation8 + $0x58] sm:$0xff]
    %v890 = vld [vmem:[#allocation8 + $0x60] sm:$0xff]
    %v891 = vld [vmem:[#allocation8 + $0x68] sm:$0xff]
    %v892 = vld [vmem:[#allocation8 + $0x70] sm:$0xff]
    %v893 = vld [vmem:[#allocation8 + $0x78] sm:$0xff]
    %v894 = vld [vmem:[#allocation8 + $0x80] sm:$0xff]
    %v895 = vld [vmem:[#allocation8 + $0x88] sm:$0xff]
    %v896 = vld [vmem:[#allocation8 + $0x90] sm:$0xff]
    %v897 = vld [vmem:[#allocation8 + $0x98] sm:$0xff]
    %v898 = vld [vmem:[#allocation8 + $0xa0] sm:$0xff]
    %v899 = vld [vmem:[#allocation8 + $0xa8] sm:$0xff]
    %v900 = vld [vmem:[#allocation8 + $0xb0] sm:$0xff]
    %v901 = vld [vmem:[#allocation8 + $0xb8] sm:$0xff]
    %v902 = vld [vmem:[#allocation8 + $0xc0] sm:$0xff]
    %v903 = vld [vmem:[#allocation8 + $0xc8] sm:$0xff]
    %v904 = vld [vmem:[#allocation8 + $0xd0] sm:$0xff]
    %v905 = vld [vmem:[#allocation8 + $0xd8] sm:$0xff]
    %v906 = vld [vmem:[#allocation8 + $0xe0] sm:$0xff]
    %v907 = vld [vmem:[#allocation8 + $0xe8] sm:$0xff]
    %v908 = vld [vmem:[#allocation8 + $0xf0] sm:$0xff]
    %v909 = vld [vmem:[#allocation8 + $0xf8] sm:$0xff]
    %v910 = vld [vmem:[#allocation2] sm:$0xff]
    %v911 = vld [vmem:[#allocation2 + $0x8] sm:$0xff]
    %v912 = vld [vmem:[#allocation2 + $0x10] sm:$0xff]
    %v913 = vld [vmem:[#allocation2 + $0x18] sm:$0xff]
    %v914 = vld [vmem:[#allocation2 + $0x20] sm:$0xff]
    %v915 = vld [vmem:[#allocation2 + $0x28] sm:$0xff]
    %v916 = vld [vmem:[#allocation2 + $0x30] sm:$0xff]
    %v917 = vld [vmem:[#allocation2 + $0x38] sm:$0xff]
    %v918 = vld [vmem:[#allocation2 + $0x40] sm:$0xff]
    %v919 = vld [vmem:[#allocation2 + $0x48] sm:$0xff]
    %v920 = vld [vmem:[#allocation2 + $0x50] sm:$0xff]
    %v921 = vld [vmem:[#allocation2 + $0x58] sm:$0xff]
    %v922 = vld [vmem:[#allocation2 + $0x60] sm:$0xff]
    %v923 = vld [vmem:[#allocation2 + $0x68] sm:$0xff]
    %v924 = vld [vmem:[#allocation2 + $0x70] sm:$0xff]
    %v925 = vld [vmem:[#allocation2 + $0x78] sm:$0xff]
    %v926 = vld [vmem:[#allocation2 + $0x80] sm:$0xff]
    %v927 = vld [vmem:[#allocation2 + $0x88] sm:$0xff]
    %v928 = vld [vmem:[#allocation2 + $0x90] sm:$0xff]
    %v929 = vld [vmem:[#allocation2 + $0x98] sm:$0xff]
    %v930 = vld [vmem:[#allocation2 + $0xa0] sm:$0xff]
    %v931 = vld [vmem:[#allocation2 + $0xa8] sm:$0xff]
    %v932 = vld [vmem:[#allocation2 + $0xb0] sm:$0xff]
    %v933 = vld [vmem:[#allocation2 + $0xb8] sm:$0xff]
    %v934 = vld [vmem:[#allocation2 + $0xc0] sm:$0xff]
    %v935 = vld [vmem:[#allocation2 + $0xc8] sm:$0xff]
    %v936 = vld [vmem:[#allocation2 + $0xd0] sm:$0xff]
    %v937 = vld [vmem:[#allocation2 + $0xd8] sm:$0xff]
    %v938 = vld [vmem:[#allocation2 + $0xe0] sm:$0xff]
    %v939 = vld [vmem:[#allocation2 + $0xe8] sm:$0xff]
    %v940 = vld [vmem:[#allocation2 + $0xf0] sm:$0xff]
    %v941 = vld [vmem:[#allocation2 + $0xf8] sm:$0xff]
    %v942 = vpack.c.bf16 %v911, %v910
    %v943 = vpack.c.bf16 %v913, %v912
    %v944 = vpack.c.bf16 %v915, %v914
    %v945 = vpack.c.bf16 %v917, %v916
    %v946 = vpack.c.bf16 %v919, %v918
    %v947 = vpack.c.bf16 %v921, %v920
    %v948 = vpack.c.bf16 %v923, %v922
    %v949 = vpack.c.bf16 %v925, %v924
    %v950 = vpack.c.bf16 %v927, %v926
    %v951 = vpack.c.bf16 %v929, %v928
    %v952 = vpack.c.bf16 %v931, %v930
    %v953 = vpack.c.bf16 %v933, %v932
    %v954 = vpack.c.bf16 %v935, %v934
    %v955 = vpack.c.bf16 %v937, %v936
    %v956 = vpack.c.bf16 %v939, %v938
    %v957 = vpack.c.bf16 %v941, %v940
    %v990 = vunpack.c.l.b16 %v878
    %v991 = vunpack.c.h.b16 %v878
    %v992 = vunpack.c.l.b16 %v879
    %v993 = vunpack.c.h.b16 %v879
    %v994 = vunpack.c.l.b16 %v880
    %v995 = vunpack.c.h.b16 %v880
    %v996 = vunpack.c.l.b16 %v881
    %v997 = vunpack.c.h.b16 %v881
    %v998 = vunpack.c.l.b16 %v882
    %v999 = vunpack.c.h.b16 %v882
    %v1000 = vunpack.c.l.b16 %v883
    %v1001 = vunpack.c.h.b16 %v883
    %v1002 = vunpack.c.l.b16 %v884
    %v1003 = vunpack.c.h.b16 %v884
    %v1004 = vunpack.c.l.b16 %v885
    %v1005 = vunpack.c.h.b16 %v885
    %v1006 = vunpack.c.l.b16 %v886
    %v1007 = vunpack.c.h.b16 %v886
    %v1008 = vunpack.c.l.b16 %v887
    %v1009 = vunpack.c.h.b16 %v887
    %v1010 = vunpack.c.l.b16 %v888
    %v1011 = vunpack.c.h.b16 %v888
    %v1012 = vunpack.c.l.b16 %v889
    %v1013 = vunpack.c.h.b16 %v889
    %v1014 = vunpack.c.l.b16 %v890
    %v1015 = vunpack.c.h.b16 %v890
    %v1016 = vunpack.c.l.b16 %v891
    %v1017 = vunpack.c.h.b16 %v891
    %v1018 = vunpack.c.l.b16 %v892
    %v1019 = vunpack.c.h.b16 %v892
    %v1020 = vunpack.c.l.b16 %v893
    %v1021 = vunpack.c.h.b16 %v893
    %v1022 = vunpack.c.l.b16 %v894
    %v1023 = vunpack.c.h.b16 %v894
    %v1024 = vunpack.c.l.b16 %v895
    %v1025 = vunpack.c.h.b16 %v895
    %v1026 = vunpack.c.l.b16 %v896
    %v1027 = vunpack.c.h.b16 %v896
    %v1028 = vunpack.c.l.b16 %v897
    %v1029 = vunpack.c.h.b16 %v897
    %v1030 = vunpack.c.l.b16 %v898
    %v1031 = vunpack.c.h.b16 %v898
    %v1032 = vunpack.c.l.b16 %v899
    %v1033 = vunpack.c.h.b16 %v899
    %v1034 = vunpack.c.l.b16 %v900
    %v1035 = vunpack.c.h.b16 %v900
    %v1036 = vunpack.c.l.b16 %v901
    %v1037 = vunpack.c.h.b16 %v901
    %v1038 = vunpack.c.l.b16 %v902
    %v1039 = vunpack.c.h.b16 %v902
    %v1040 = vunpack.c.l.b16 %v903
    %v1041 = vunpack.c.h.b16 %v903
    %v1042 = vunpack.c.l.b16 %v904
    %v1043 = vunpack.c.h.b16 %v904
    %v1044 = vunpack.c.l.b16 %v905
    %v1045 = vunpack.c.h.b16 %v905
    %v1046 = vunpack.c.l.b16 %v906
    %v1047 = vunpack.c.h.b16 %v906
    %v1048 = vunpack.c.l.b16 %v907
    %v1049 = vunpack.c.h.b16 %v907
    %v1050 = vunpack.c.l.b16 %v908
    %v1051 = vunpack.c.h.b16 %v908
    %v1052 = vunpack.c.l.b16 %v909
    %v1053 = vunpack.c.h.b16 %v909
    %v1054 = vpack.c.b16 %v992, %v990
    %v1055 = vpack.c.b16 %v993, %v991
    %v1056 = vpack.c.b16 %v996, %v994
    %v1057 = vpack.c.b16 %v997, %v995
    %v1058 = vpack.c.b16 %v1000, %v998
    %v1059 = vpack.c.b16 %v1001, %v999
    %v1060 = vpack.c.b16 %v1004, %v1002
    %v1061 = vpack.c.b16 %v1005, %v1003
    %v1062 = vpack.c.b16 %v1008, %v1006
    %v1063 = vpack.c.b16 %v1009, %v1007
    %v1064 = vpack.c.b16 %v1012, %v1010
    %v1065 = vpack.c.b16 %v1013, %v1011
    %v1066 = vpack.c.b16 %v1016, %v1014
    %v1067 = vpack.c.b16 %v1017, %v1015
    %v1068 = vpack.c.b16 %v1020, %v1018
    %v1069 = vpack.c.b16 %v1021, %v1019
    %v1070 = vpack.c.b16 %v1024, %v1022
    %v1071 = vpack.c.b16 %v1025, %v1023
    %v1072 = vpack.c.b16 %v1028, %v1026
    %v1073 = vpack.c.b16 %v1029, %v1027
    %v1074 = vpack.c.b16 %v1032, %v1030
    %v1075 = vpack.c.b16 %v1033, %v1031
    %v1076 = vpack.c.b16 %v1036, %v1034
    %v1077 = vpack.c.b16 %v1037, %v1035
    %v1078 = vpack.c.b16 %v1040, %v1038
    %v1079 = vpack.c.b16 %v1041, %v1039
    %v1080 = vpack.c.b16 %v1044, %v1042
    %v1081 = vpack.c.b16 %v1045, %v1043
    %v1082 = vpack.c.b16 %v1048, %v1046
    %v1083 = vpack.c.b16 %v1049, %v1047
    %v1084 = vpack.c.b16 %v1052, %v1050
    %v1085 = vpack.c.b16 %v1053, %v1051
    %1118 = vmatprep.subr.bf16.mxu0 0
    %1119 = vmatpush1.bf16.msra.mxu0 %v942
    %1120 = vmatprep.subr.bf16.mxu0 0
    %1121 = vmatpush1.bf16.msra.mxu0 %v943
    %1122 = vmatprep.subr.bf16.mxu0 0
    %1123 = vmatpush1.bf16.msra.mxu0 %v944
    %1124 = vmatprep.subr.bf16.mxu0 0
    %1125 = vmatpush1.bf16.msra.mxu0 %v945
    %1126 = vmatprep.subr.bf16.mxu0 0
    %1127 = vmatpush1.bf16.msra.mxu0 %v946
    %1128 = vmatprep.subr.bf16.mxu0 0
    %1129 = vmatpush1.bf16.msra.mxu0 %v947
    %1130 = vmatprep.subr.bf16.mxu0 0
    %1131 = vmatpush1.bf16.msra.mxu0 %v948
    %1132 = vmatprep.subr.bf16.mxu0 0
    %1133 = vmatpush1.bf16.msra.mxu0 %v949
    %1134 = vmatprep.subr.bf16.mxu0 0
    %1135 = vmatpush1.bf16.msra.mxu0 %v950
    %1136 = vmatprep.subr.bf16.mxu0 0
    %1137 = vmatpush1.bf16.msra.mxu0 %v951
    %1138 = vmatprep.subr.bf16.mxu0 0
    %1139 = vmatpush1.bf16.msra.mxu0 %v952
    %1140 = vmatprep.subr.bf16.mxu0 0
    %1141 = vmatpush1.bf16.msra.mxu0 %v953
    %1142 = vmatprep.subr.bf16.mxu0 0
    %1143 = vmatpush1.bf16.msra.mxu0 %v954
    %1144 = vmatprep.subr.bf16.mxu0 0
    %1145 = vmatpush1.bf16.msra.mxu0 %v955
    %1146 = vmatprep.subr.bf16.mxu0 0
    %1147 = vmatpush1.bf16.msra.mxu0 %v956
    %1148 = vmatprep.subr.bf16.mxu0 0
    %1149 = vmatpush1.bf16.msra.mxu0 %v957
    %1150 = vmatprep.mubr.bf16.mxu0 %v1055
    %1151 = vmatmul.mubr.bf16.gmra.mrb[0].mxu0 %v1054
    %v1152 = vpop.f32.mrb[0].mxu0
    %v1153 = vadd.f32 0.0, %v1152
    %v1154 = vpop.f32.mrb[0].mxu0
    %v1155 = vpop.f32.mrb[0].mxu0
    %v1156 = vadd.f32 0.0, %v1155
    %v1157 = vpop.f32.mrb[0].mxu0
    %1158 = vmatprep.mubr.bf16.mxu0 %v1057
    %1159 = vmatmul.mubr.bf16.gmra.mrb[0].mxu0 %v1056
    %v1160 = vpop.f32.mrb[0].mxu0
    %v1161 = vadd.f32 0.0, %v1160
    %v1162 = vpop.f32.mrb[0].mxu0
    %v1163 = vpop.f32.mrb[0].mxu0
    %v1164 = vadd.f32 0.0, %v1163
    %v1165 = vpop.f32.mrb[0].mxu0
    %1166 = vmatprep.mubr.bf16.mxu0 %v1059
    %1167 = vmatmul.mubr.bf16.gmra.mrb[0].mxu0 %v1058
    %v1168 = vpop.f32.mrb[0].mxu0
    %v1169 = vadd.f32 0.0, %v1168
    %v1170 = vpop.f32.mrb[0].mxu0
    %v1171 = vpop.f32.mrb[0].mxu0
    %v1172 = vadd.f32 0.0, %v1171
    %v1173 = vpop.f32.mrb[0].mxu0
    %1174 = vmatprep.mubr.bf16.mxu0 %v1061
    %1175 = vmatmul.mubr.bf16.gmra.mrb[0].mxu0 %v1060
    %v1176 = vpop.f32.mrb[0].mxu0
    %v1177 = vadd.f32 0.0, %v1176
    %v1178 = vpop.f32.mrb[0].mxu0
    %v1179 = vpop.f32.mrb[0].mxu0
    %v1180 = vadd.f32 0.0, %v1179
    %v1181 = vpop.f32.mrb[0].mxu0
    %1182 = vmatprep.mubr.bf16.mxu0 %v1063
    %1183 = vmatmul.mubr.bf16.gmra.mrb[0].mxu0 %v1062
    %v1184 = vpop.f32.mrb[0].mxu0
    %v1185 = vadd.f32 0.0, %v1184
    %v1186 = vpop.f32.mrb[0].mxu0
    %v1187 = vpop.f32.mrb[0].mxu0
    %v1188 = vadd.f32 0.0, %v1187
    %v1189 = vpop.f32.mrb[0].mxu0
    %1190 = vmatprep.mubr.bf16.mxu0 %v1065
    %1191 = vmatmul.mubr.bf16.gmra.mrb[0].mxu0 %v1064
    %v1192 = vpop.f32.mrb[0].mxu0
    %v1193 = vadd.f32 0.0, %v1192
    %v1194 = vpop.f32.mrb[0].mxu0
    %v1195 = vpop.f32.mrb[0].mxu0
    %v1196 = vadd.f32 0.0, %v1195
    %v1197 = vpop.f32.mrb[0].mxu0
    %1198 = vmatprep.mubr.bf16.mxu0 %v1067
    %1199 = vmatmul.mubr.bf16.gmra.mrb[0].mxu0 %v1066
    %v1200 = vpop.f32.mrb[0].mxu0
    %v1201 = vadd.f32 0.0, %v1200
    %v1202 = vpop.f32.mrb[0].mxu0
    %v1203 = vpop.f32.mrb[0].mxu0
    %v1204 = vadd.f32 0.0, %v1203
    %v1205 = vpop.f32.mrb[0].mxu0
    %1206 = vmatprep.mubr.bf16.mxu0 %v1069
    %1207 = vmatmul.mubr.bf16.gmra.mrb[0].mxu0 %v1068
    %v1208 = vpop.f32.mrb[0].mxu0
    %v1209 = vadd.f32 0.0, %v1208
    %v1210 = vpop.f32.mrb[0].mxu0
    %v1211 = vpop.f32.mrb[0].mxu0
    %v1212 = vadd.f32 0.0, %v1211
    %v1213 = vpop.f32.mrb[0].mxu0
    %1214 = vmatprep.mubr.bf16.mxu0 %v1071
    %1215 = vmatmul.mubr.bf16.gmra.mrb[0].mxu0 %v1070
    %v1216 = vpop.f32.mrb[0].mxu0
    %v1217 = vadd.f32 0.0, %v1216
    %v1218 = vpop.f32.mrb[0].mxu0
    %v1219 = vpop.f32.mrb[0].mxu0
    %v1220 = vadd.f32 0.0, %v1219
    %v1221 = vpop.f32.mrb[0].mxu0
    %1222 = vmatprep.mubr.bf16.mxu0 %v1073
    %1223 = vmatmul.mubr.bf16.gmra.mrb[0].mxu0 %v1072
    %v1224 = vpop.f32.mrb[0].mxu0
    %v1225 = vadd.f32 0.0, %v1224
    %v1226 = vpop.f32.mrb[0].mxu0
    %v1227 = vpop.f32.mrb[0].mxu0
    %v1228 = vadd.f32 0.0, %v1227
    %v1229 = vpop.f32.mrb[0].mxu0
    %1230 = vmatprep.mubr.bf16.mxu0 %v1075
    %1231 = vmatmul.mubr.bf16.gmra.mrb[0].mxu0 %v1074
    %v1232 = vpop.f32.mrb[0].mxu0
    %v1233 = vadd.f32 0.0, %v1232
    %v1234 = vpop.f32.mrb[0].mxu0
    %v1235 = vpop.f32.mrb[0].mxu0
    %v1236 = vadd.f32 0.0, %v1235
    %v1237 = vpop.f32.mrb[0].mxu0
    %1238 = vmatprep.mubr.bf16.mxu0 %v1077
    %1239 = vmatmul.mubr.bf16.gmra.mrb[0].mxu0 %v1076
    %v1240 = vpop.f32.mrb[0].mxu0
    %v1241 = vadd.f32 0.0, %v1240
    %v1242 = vpop.f32.mrb[0].mxu0
    %v1243 = vpop.f32.mrb[0].mxu0
    %v1244 = vadd.f32 0.0, %v1243
    %v1245 = vpop.f32.mrb[0].mxu0
    %1246 = vmatprep.mubr.bf16.mxu0 %v1079
    %1247 = vmatmul.mubr.bf16.gmra.mrb[0].mxu0 %v1078
    %v1248 = vpop.f32.mrb[0].mxu0
    %v1249 = vadd.f32 0.0, %v1248
    %v1250 = vpop.f32.mrb[0].mxu0
    %v1251 = vpop.f32.mrb[0].mxu0
    %v1252 = vadd.f32 0.0, %v1251
    %v1253 = vpop.f32.mrb[0].mxu0
    %1254 = vmatprep.mubr.bf16.mxu0 %v1081
    %1255 = vmatmul.mubr.bf16.gmra.mrb[0].mxu0 %v1080
    %v1256 = vpop.f32.mrb[0].mxu0
    %v1257 = vadd.f32 0.0, %v1256
    %v1258 = vpop.f32.mrb[0].mxu0
    %v1259 = vpop.f32.mrb[0].mxu0
    %v1260 = vadd.f32 0.0, %v1259
    %v1261 = vpop.f32.mrb[0].mxu0
    %1262 = vmatprep.mubr.bf16.mxu0 %v1083
    %1263 = vmatmul.mubr.bf16.gmra.mrb[0].mxu0 %v1082
    %v1264 = vpop.f32.mrb[0].mxu0
    %v1265 = vadd.f32 0.0, %v1264
    %v1266 = vpop.f32.mrb[0].mxu0
    %v1267 = vpop.f32.mrb[0].mxu0
    %v1268 = vadd.f32 0.0, %v1267
    %v1269 = vpop.f32.mrb[0].mxu0
    %1270 = vmatprep.mubr.bf16.mxu0 %v1085
    %1271 = vmatmul.mubr.bf16.gmra.mrb[0].mxu0 %v1084
    %v1272 = vpop.f32.mrb[0].mxu0
    %v1273 = vadd.f32 0.0, %v1272
    %v1274 = vpop.f32.mrb[0].mxu0
    %v1275 = vpop.f32.mrb[0].mxu0
    %v1276 = vadd.f32 0.0, %v1275
    %v1277 = vpop.f32.mrb[0].mxu0
    %1278 = vdwg.mxu0
    %1279 = vst [vmem:[#allocation2] sm:$0xff] %v1153
    %1280 = vst [vmem:[#allocation2 + $0x8] sm:$0xff] %v1156
    %1281 = vst [vmem:[#allocation2 + $0x10] sm:$0xff] %v1161
    %1282 = vst [vmem:[#allocation2 + $0x18] sm:$0xff] %v1164
    %1283 = vst [vmem:[#allocation2 + $0x20] sm:$0xff] %v1169
    %1284 = vst [vmem:[#allocation2 + $0x28] sm:$0xff] %v1172
    %1285 = vst [vmem:[#allocation2 + $0x30] sm:$0xff] %v1177
    %1286 = vst [vmem:[#allocation2 + $0x38] sm:$0xff] %v1180
    %1287 = vst [vmem:[#allocation2 + $0x40] sm:$0xff] %v1185
    %1288 = vst [vmem:[#allocation2 + $0x48] sm:$0xff] %v1188
    %1289 = vst [vmem:[#allocation2 + $0x50] sm:$0xff] %v1193
    %1290 = vst [vmem:[#allocation2 + $0x58] sm:$0xff] %v1196
    %1291 = vst [vmem:[#allocation2 + $0x60] sm:$0xff] %v1201
    %1292 = vst [vmem:[#allocation2 + $0x68] sm:$0xff] %v1204
    %1293 = vst [vmem:[#allocation2 + $0x70] sm:$0xff] %v1209
    %1294 = vst [vmem:[#allocation2 + $0x78] sm:$0xff] %v1212
    %1295 = vst [vmem:[#allocation2 + $0x80] sm:$0xff] %v1217
    %1296 = vst [vmem:[#allocation2 + $0x88] sm:$0xff] %v1220
    %1297 = vst [vmem:[#allocation2 + $0x90] sm:$0xff] %v1225
    %1298 = vst [vmem:[#allocation2 + $0x98] sm:$0xff] %v1228
    %1299 = vst [vmem:[#allocation2 + $0xa0] sm:$0xff] %v1233
    %1300 = vst [vmem:[#allocation2 + $0xa8] sm:$0xff] %v1236
    %1301 = vst [vmem:[#allocation2 + $0xb0] sm:$0xff] %v1241
    %1302 = vst [vmem:[#allocation2 + $0xb8] sm:$0xff] %v1244
    %1303 = vst [vmem:[#allocation2 + $0xc0] sm:$0xff] %v1249
    %1304 = vst [vmem:[#allocation2 + $0xc8] sm:$0xff] %v1252
    %1305 = vst [vmem:[#allocation2 + $0xd0] sm:$0xff] %v1257
    %1306 = vst [vmem:[#allocation2 + $0xd8] sm:$0xff] %v1260
    %1307 = vst [vmem:[#allocation2 + $0xe0] sm:$0xff] %v1265
    %1308 = vst [vmem:[#allocation2 + $0xe8] sm:$0xff] %v1268
    %1309 = vst [vmem:[#allocation2 + $0xf0] sm:$0xff] %v1273
    %1310 = vst [vmem:[#allocation2 + $0xf8] sm:$0xff] %v1276
    %v1311 = vld [vmem:[#allocation2] sm:$0xff]
    %v1312 = vld [vmem:[#allocation2 + $0x8] sm:$0xff]
    %v1313 = vld [vmem:[#allocation2 + $0x10] sm:$0xff]
    %v1314 = vld [vmem:[#allocation2 + $0x18] sm:$0xff]
    %v1315 = vld [vmem:[#allocation2 + $0x20] sm:$0xff]
    %v1316 = vld [vmem:[#allocation2 + $0x28] sm:$0xff]
    %v1317 = vld [vmem:[#allocation2 + $0x30] sm:$0xff]
    %v1318 = vld [vmem:[#allocation2 + $0x38] sm:$0xff]
    %v1319 = vld [vmem:[#allocation2 + $0x40] sm:$0xff]
    %v1320 = vld [vmem:[#allocation2 + $0x48] sm:$0xff]
    %v1321 = vld [vmem:[#allocation2 + $0x50] sm:$0xff]
    %v1322 = vld [vmem:[#allocation2 + $0x58] sm:$0xff]
    %v1323 = vld [vmem:[#allocation2 + $0x60] sm:$0xff]
    %v1324 = vld [vmem:[#allocation2 + $0x68] sm:$0xff]
    %v1325 = vld [vmem:[#allocation2 + $0x70] sm:$0xff]
    %v1326 = vld [vmem:[#allocation2 + $0x78] sm:$0xff]
    %v1327 = vld [vmem:[#allocation2 + $0x80] sm:$0xff]
    %v1328 = vld [vmem:[#allocation2 + $0x88] sm:$0xff]
    %v1329 = vld [vmem:[#allocation2 + $0x90] sm:$0xff]
    %v1330 = vld [vmem:[#allocation2 + $0x98] sm:$0xff]
    %v1331 = vld [vmem:[#allocation2 + $0xa0] sm:$0xff]
    %v1332 = vld [vmem:[#allocation2 + $0xa8] sm:$0xff]
    %v1333 = vld [vmem:[#allocation2 + $0xb0] sm:$0xff]
    %v1334 = vld [vmem:[#allocation2 + $0xb8] sm:$0xff]
    %v1335 = vld [vmem:[#allocation2 + $0xc0] sm:$0xff]
    %v1336 = vld [vmem:[#allocation2 + $0xc8] sm:$0xff]
    %v1337 = vld [vmem:[#allocation2 + $0xd0] sm:$0xff]
    %v1338 = vld [vmem:[#allocation2 + $0xd8] sm:$0xff]
    %v1339 = vld [vmem:[#allocation2 + $0xe0] sm:$0xff]
    %v1340 = vld [vmem:[#allocation2 + $0xe8] sm:$0xff]
    %v1341 = vld [vmem:[#allocation2 + $0xf0] sm:$0xff]
    %v1342 = vld [vmem:[#allocation2 + $0xf8] sm:$0xff]
    %v1343 = vld [vmem:[%s3] sm:$0x1]
    %v1345 = vlaneseq
    %v1346 = vshrl.u32 %v1345, 7
    %v1347 = vsub.s32 0, %v1346
    %v1348 = vrot.slane %v1343, %v1347
    %v1350 = vadd.f32 %v1311, %v1348
    %v1351 = vadd.f32 %v1312, %v1348
    %v1352 = vadd.f32 %v1313, %v1348
    %v1353 = vadd.f32 %v1314, %v1348
    %v1354 = vadd.f32 %v1315, %v1348
    %v1355 = vadd.f32 %v1316, %v1348
    %v1356 = vadd.f32 %v1317, %v1348
    %v1357 = vadd.f32 %v1318, %v1348
    %v1358 = vadd.f32 %v1319, %v1348
    %v1359 = vadd.f32 %v1320, %v1348
    %v1360 = vadd.f32 %v1321, %v1348
    %v1361 = vadd.f32 %v1322, %v1348
    %v1362 = vadd.f32 %v1323, %v1348
    %v1363 = vadd.f32 %v1324, %v1348
    %v1364 = vadd.f32 %v1325, %v1348
    %v1365 = vadd.f32 %v1326, %v1348
    %v1366 = vadd.f32 %v1327, %v1348
    %v1367 = vadd.f32 %v1328, %v1348
    %v1368 = vadd.f32 %v1329, %v1348
    %v1369 = vadd.f32 %v1330, %v1348
    %v1370 = vadd.f32 %v1331, %v1348
    %v1371 = vadd.f32 %v1332, %v1348
    %v1372 = vadd.f32 %v1333, %v1348
    %v1373 = vadd.f32 %v1334, %v1348
    %v1374 = vadd.f32 %v1335, %v1348
    %v1375 = vadd.f32 %v1336, %v1348
    %v1376 = vadd.f32 %v1337, %v1348
    %v1377 = vadd.f32 %v1338, %v1348
    %v1378 = vadd.f32 %v1339, %v1348
    %v1379 = vadd.f32 %v1340, %v1348
    %v1380 = vadd.f32 %v1341, %v1348
    %v1381 = vadd.f32 %v1342, %v1348
    %1382 = vst [vmem:[#allocation9] sm:$0xff] %v1350
    %1383 = vst [vmem:[#allocation9 + $0x8] sm:$0xff] %v1351
    %1384 = vst [vmem:[#allocation9 + $0x10] sm:$0xff] %v1352
    %1385 = vst [vmem:[#allocation9 + $0x18] sm:$0xff] %v1353
    %1386 = vst [vmem:[#allocation9 + $0x20] sm:$0xff] %v1354
    %1387 = vst [vmem:[#allocation9 + $0x28] sm:$0xff] %v1355
    %1388 = vst [vmem:[#allocation9 + $0x30] sm:$0xff] %v1356
    %1389 = vst [vmem:[#allocation9 + $0x38] sm:$0xff] %v1357
    %1390 = vst [vmem:[#allocation9 + $0x40] sm:$0xff] %v1358
    %1391 = vst [vmem:[#allocation9 + $0x48] sm:$0xff] %v1359
    %1392 = vst [vmem:[#allocation9 + $0x50] sm:$0xff] %v1360
    %1393 = vst [vmem:[#allocation9 + $0x58] sm:$0xff] %v1361
    %1394 = vst [vmem:[#allocation9 + $0x60] sm:$0xff] %v1362
    %1395 = vst [vmem:[#allocation9 + $0x68] sm:$0xff] %v1363
    %1396 = vst [vmem:[#allocation9 + $0x70] sm:$0xff] %v1364
    %1397 = vst [vmem:[#allocation9 + $0x78] sm:$0xff] %v1365
    %1398 = vst [vmem:[#allocation9 + $0x80] sm:$0xff] %v1366
    %1399 = vst [vmem:[#allocation9 + $0x88] sm:$0xff] %v1367
    %1400 = vst [vmem:[#allocation9 + $0x90] sm:$0xff] %v1368
    %1401 = vst [vmem:[#allocation9 + $0x98] sm:$0xff] %v1369
    %1402 = vst [vmem:[#allocation9 + $0xa0] sm:$0xff] %v1370
    %1403 = vst [vmem:[#allocation9 + $0xa8] sm:$0xff] %v1371
    %1404 = vst [vmem:[#allocation9 + $0xb0] sm:$0xff] %v1372
    %1405 = vst [vmem:[#allocation9 + $0xb8] sm:$0xff] %v1373
    %1406 = vst [vmem:[#allocation9 + $0xc0] sm:$0xff] %v1374
    %1407 = vst [vmem:[#allocation9 + $0xc8] sm:$0xff] %v1375
    %1408 = vst [vmem:[#allocation9 + $0xd0] sm:$0xff] %v1376
    %1409 = vst [vmem:[#allocation9 + $0xd8] sm:$0xff] %v1377
    %1410 = vst [vmem:[#allocation9 + $0xe0] sm:$0xff] %v1378
    %1411 = vst [vmem:[#allocation9 + $0xe8] sm:$0xff] %v1379
    %1412 = vst [vmem:[#allocation9 + $0xf0] sm:$0xff] %v1380
    %1413 = vst [vmem:[#allocation9 + $0xf8] sm:$0xff] %v1381
    // Predicated region
    $region30: #{tpu_custom_call.1} parent=1 // pred_check
      _
    $region31: #{tpu_custom_call.1} parent=1 // pred_check_branch
      %1415 = sbr.rel (0) target = $region33
    $region32: #{tpu_custom_call.1} parent=1 // pred_region
      %s1417 = ssub.s32 4096, 4096
      %1418 = vsyncadd [#allocation5], %s1417
      %s1419 = sshll.u32 [#allocation9], 4
      %s1420 = int_to_ptr.vmem [resolvable:$true] %s1419
      %1425 = dma.vmem_to_hbm [thread:$0]  %s1420, 4096, %s4, [#allocation5], 128, 128, 8
    $region33: #{tpu_custom_call.1} parent=1 // pred_fallthru
      _
    // Predicated region
    $region34: #{tpu_custom_call.1} parent=1 // pred_check
      _
    $region35: #{tpu_custom_call.1} parent=1 // pred_check_branch
      %1427 = sbr.rel (0) target = $region37
    $region36: #{tpu_custom_call.1} parent=1 // pred_region
      %1428 = dma.done [#allocation5], 4096
    $region37: #{tpu_custom_call.1} parent=1 // pred_fallthru
      _
    %1429 = vsyncpa [#allocation4], 1
    %1430 = vsyncpa [#allocation7], 1
    %1431 = vsyncpa [#allocation5], 1

</llo_original>
